<compile_context>
chip_gen: v7x
topology: tpu7x:2x2x1
jax: 0.10.0
libtpu: 0.0.40
codegen_flags: <defaults>
</compile_context>

<pallas_src>
import jax
import jax.numpy as jnp
from jax.experimental import pallas as pl
from jax.experimental.pallas import tpu as pltpu


def _leaky_relu(x, slope):
    return jnp.where(x >= 0, x, slope * x)


def _make_kernel(H, W, slope, halo):
    P = H * W
    taps = [(dy, dx) for dy in (-1, 0, 1) for dx in (-1, 0, 1)]

    def conv3x3(pad_ref, w_ref, b_ref, mask_l, mask_r):
        # pad_ref: (C_src, 2*halo + P) zero-halo flattened image (interior at
        #          [halo:halo+P]); w_ref: (9, C_dst, C_src); b_ref: (C_dst, 1).
        # mask_l / mask_r: (C_src, P) validity masks for dx=-1 / dx=+1 taps.
        acc = None
        for t, (dy, dx) in enumerate(taps):
            k = dy * W + dx
            win = pad_ref[:, halo + k: halo + k + P]              # (C_src, P)
            if dx == -1:
                win = jnp.where(mask_l, win, 0.0)
            elif dx == 1:
                win = jnp.where(mask_r, win, 0.0)
            contrib = jnp.dot(w_ref[t], win,
                              preferred_element_type=jnp.float32)
            # TODO(synk): v6e - fuse taps into one matmul; v7x - accumulate in
            # the MRB instead of popping + VPU-adding each tap.
            acc = contrib if acc is None else acc + contrib
        return acc + b_ref[...]                                   # (C_dst, P)

    def kernel(x_ref, wd_ref, bd_ref, w1_ref, b1_ref, w2_ref, b2_ref,
               o_ref, xpad_ref, ypad_ref):
        c_in = x_ref.shape[1]
        c_out = o_ref.shape[1]

        # Border masks hoisted out of the tap loops (computed once per image;
        # JAX does not CSE the iota/compare/broadcast).
        col = jax.lax.broadcasted_iota(jnp.int32, (1, P), 1) % W
        mask_l_row = col >= 1            # pixel has an in-row left neighbour
        mask_r_row = col < (W - 1)       # pixel has an in-row right neighbour
        mask_l_in = jnp.broadcast_to(mask_l_row, (c_in, P))
        mask_r_in = jnp.broadcast_to(mask_r_row, (c_in, P))
        mask_l_out = jnp.broadcast_to(mask_l_row, (c_out, P))
        mask_r_out = jnp.broadcast_to(mask_r_row, (c_out, P))

        # Zero only the two halo strips; the interior [halo:halo+P] is fully
        # overwritten below (saves two full (C, P) store passes per image).
        xpad_ref[:, :halo] = jnp.zeros((c_in, halo), xpad_ref.dtype)
        xpad_ref[:, halo + P:] = jnp.zeros((c_in, halo), xpad_ref.dtype)
        ypad_ref[:, :halo] = jnp.zeros((c_out, halo), ypad_ref.dtype)
        ypad_ref[:, halo + P:] = jnp.zeros((c_out, halo), ypad_ref.dtype)

        # Fill the xpad interior via a local copy that bypasses vregs
        # (no (C_in, P) vld+vst round trip through vector registers).
        pltpu.sync_copy(x_ref.at[0], xpad_ref.at[:, halo: halo + P])

        # ---- down: 3x3 conv, C_in -> C_out (also the identity branch) ----
        y = conv3x3(xpad_ref, wd_ref, bd_ref, mask_l_in, mask_r_in)
        ypad_ref[:, halo: halo + P] = y.astype(ypad_ref.dtype)

        # ---- conv path: 3x3 conv -> LeakyReLU -> 1x1 conv -> LeakyReLU ----
        # y is NOT kept live across the convs; the identity branch is re-read
        # from ypad for the residual add to avoid vreg spills.
        h = _leaky_relu(conv3x3(ypad_ref, w1_ref, b1_ref,
                                mask_l_out, mask_r_out), slope)
        z = jnp.dot(w2_ref[...], h,
                    preferred_element_type=jnp.float32) + b2_ref[...]
        z = _leaky_relu(z, slope)

        # ---- residual add (identity re-read from ypad interior) ----
        o_ref[0] = (z + ypad_ref[:, halo: halo + P]).astype(o_ref.dtype)

    return kernel


def residual_block_pallas(x, wd, bd, w1, b1, w2, b2, slope=0.01):
    """x: (N, C_in, H, W) NCHW.

    wd: (C_out, C_in, 3, 3), bd: (C_out,)   -- self.down
    w1: (C_out, C_out, 3, 3), b1: (C_out,)  -- self.conv[0]
    w2: (C_out, C_out, 1, 1), b2: (C_out,)  -- self.conv[2]
    """
    N, C_in, H, W = x.shape
    C_out = wd.shape[0]
    P = H * W
    # TODO(synk): if W (hence P) is not a multiple of 128 in real configs, pad
    # W in the wrapper so the output writeback stays lane-dense (unmasked vst).

    # Free reshape only; pixels land on the lane dimension (no NCHW<->NHWC
    # transposes, no HBM-side padding of activations).
    x_flat = x.reshape(N, C_in, P)

    # (C_out, C_in, 3, 3) -> (9, C_out, C_in); tap index t = ky*3 + kx.
    wd_t = jnp.transpose(wd, (2, 3, 0, 1)).reshape(9, C_out, C_in).astype(jnp.float32)
    w1_t = jnp.transpose(w1, (2, 3, 0, 1)).reshape(9, C_out, C_out).astype(jnp.float32)
    w2_m = w2.reshape(C_out, C_out).astype(jnp.float32)
    bd_c = bd.reshape(C_out, 1).astype(jnp.float32)
    b1_c = b1.reshape(C_out, 1).astype(jnp.float32)
    b2_c = b2.reshape(C_out, 1).astype(jnp.float32)

    # Lane-aligned halo, large enough for the +/-(W+1) tap offsets.
    halo = pl.cdiv(W + 1, 128) * 128
    pad_len = P + 2 * halo

    kernel = _make_kernel(H, W, slope, halo)

    # Explicit scoped-VMEM budget: scratch + double-buffered in/out blocks +
    # weights, with headroom (defaults of 16/32 MiB are below what moderate
    # images need).  Capped at 64 MiB so it remains valid on v7x.
    x_item = jnp.dtype(x.dtype).itemsize
    vmem_need = (
        C_in * pad_len * x_item                      # xpad scratch
        + C_out * pad_len * 4                        # ypad scratch (f32)
        + 2 * C_in * P * x_item                      # double-buffered x blocks
        + 2 * C_out * P * x_item                     # double-buffered out blocks
        + (9 * C_out * C_in + 9 * C_out * C_out
           + C_out * C_out + 3 * C_out) * 4          # weights + biases
    )
    vmem_limit = int(min(64 << 20, max(32 << 20, 2 * vmem_need + (2 << 20))))

    out_flat = pl.pallas_call(
        kernel,
        out_shape=jax.ShapeDtypeStruct((N, C_out, P), x.dtype),
        grid_spec=pltpu.PrefetchScalarGridSpec(
            num_scalar_prefetch=0,
            grid=(N,),
            in_specs=[
                pl.BlockSpec((1, C_in, P), lambda n: (n, 0, 0)),       # x
                pl.BlockSpec((9, C_out, C_in), lambda n: (0, 0, 0)),   # down w
                pl.BlockSpec((C_out, 1), lambda n: (0, 0)),            # down b
                pl.BlockSpec((9, C_out, C_out), lambda n: (0, 0, 0)),  # conv1 w
                pl.BlockSpec((C_out, 1), lambda n: (0, 0)),            # conv1 b
                pl.BlockSpec((C_out, C_out), lambda n: (0, 0)),        # conv2 w
                pl.BlockSpec((C_out, 1), lambda n: (0, 0)),            # conv2 b
            ],
            out_specs=pl.BlockSpec((1, C_out, P), lambda n: (n, 0, 0)),
            scratch_shapes=[
                pltpu.VMEM((C_in, pad_len), x.dtype),        # xpad
                pltpu.VMEM((C_out, pad_len), jnp.float32),   # ypad
            ],
        ),
        compiler_params=pltpu.CompilerParams(
            dimension_semantics=("parallel",),
            vmem_limit_bytes=vmem_limit),
    )(x_flat, wd_t, bd_c, w1_t, b1_c, w2_m, b2_c)

    return out_flat.reshape(N, C_out, H, W)


def residual_block_ref(x, wd, bd, w1, b1, w2, b2, slope=0.01):
    """Pure-JAX reference with the PyTorch module's semantics."""
    def conv(a, w, b, pad):
        out = jax.lax.conv_general_dilated(
            a.astype(jnp.float32), w.astype(jnp.float32),
            window_strides=(1, 1), padding=pad,
            dimension_numbers=("NCHW", "OIHW", "NCHW"),
            precision=jax.lax.Precision.HIGHEST)
        return out + b.astype(jnp.float32)[None, :, None, None]

    y = conv(x, wd, bd, [(1, 1), (1, 1)])
    h = _leaky_relu(conv(y, w1, b1, [(1, 1), (1, 1)]), slope)
    z = _leaky_relu(conv(h, w2, b2, [(0, 0), (0, 0)]), slope)
    return (z + y).astype(x.dtype)


if __name__ == "__main__":
    N, in_ch, out_ch, H, W = 2, 3, 4, 16, 16
    slope = 0.01  # nn.LeakyReLU() default negative_slope

    key = jax.random.PRNGKey(0)
    kx, k1, k2, k3, k4, k5, k6 = jax.random.split(key, 7)

    x = jax.random.normal(kx, (N, in_ch, H, W), dtype=jnp.float32)
    wd = jax.random.normal(k1, (out_ch, in_ch, 3, 3), dtype=jnp.float32) * 0.2
    bd = jax.random.normal(k2, (out_ch,), dtype=jnp.float32) * 0.1
    w1 = jax.random.normal(k3, (out_ch, out_ch, 3, 3), dtype=jnp.float32) * 0.2
    b1 = jax.random.normal(k4, (out_ch,), dtype=jnp.float32) * 0.1
    w2 = jax.random.normal(k5, (out_ch, out_ch, 1, 1), dtype=jnp.float32) * 0.2
    b2 = jax.random.normal(k6, (out_ch,), dtype=jnp.float32) * 0.1

    out = residual_block_pallas(x, wd, bd, w1, b1, w2, b2, slope=slope)
    out = jax.block_until_ready(out)

    ref = residual_block_ref(x, wd, bd, w1, b1, w2, b2, slope=slope)
    assert out.shape == (N, out_ch, H, W)
    # MXU f32 matmuls may run at reduced (bf16-pass) precision; tolerance stays
    # far below any structural error (wrong tap/mask/residual would be O(0.1-1)).
    assert jnp.allclose(out, ref, atol=2e-2, rtol=2e-2), "mismatch vs reference"

    print("KERNEL_OK")
</pallas_src>

<mosaic_0001>
module attributes {stable_mosaic.version = 11 : i64} {
  func.func @kernel(%arg0: i32, %arg1: memref<1x3x256xf32, #tpu.memory_space<vmem>>, %arg2: memref<9x4x3xf32, #tpu.memory_space<vmem>>, %arg3: memref<4x1xf32, #tpu.memory_space<vmem>>, %arg4: memref<9x4x4xf32, #tpu.memory_space<vmem>>, %arg5: memref<4x1xf32, #tpu.memory_space<vmem>>, %arg6: memref<4x4xf32, #tpu.memory_space<vmem>>, %arg7: memref<4x1xf32, #tpu.memory_space<vmem>>, %arg8: memref<1x4x256xf32, #tpu.memory_space<vmem>>, %arg9: memref<3x512xf32, #tpu.memory_space<vmem>>, %arg10: memref<4x512xf32, #tpu.memory_space<vmem>>) attributes {dimension_semantics = [#tpu.dimension_semantics<parallel>], iteration_bounds = array<i64: 2>, scalar_prefetch = 0 : i64, scratch_operands = 2 : i64, tpu.core_type = #tpu.core_type<tc>, window_params = [{transform_indices = @transform_0, window_bounds = array<i64: 1, 3, 256>}, {pipeline_mode = #tpu.pipeline_mode<synchronous>, transform_indices = @transform_1, window_bounds = array<i64: 9, 4, 3>}, {pipeline_mode = #tpu.pipeline_mode<synchronous>, transform_indices = @transform_2, window_bounds = array<i64: 4, 1>}, {pipeline_mode = #tpu.pipeline_mode<synchronous>, transform_indices = @transform_3, window_bounds = array<i64: 9, 4, 4>}, {pipeline_mode = #tpu.pipeline_mode<synchronous>, transform_indices = @transform_4, window_bounds = array<i64: 4, 1>}, {pipeline_mode = #tpu.pipeline_mode<synchronous>, transform_indices = @transform_5, window_bounds = array<i64: 4, 4>}, {pipeline_mode = #tpu.pipeline_mode<synchronous>, transform_indices = @transform_6, window_bounds = array<i64: 4, 1>}, {transform_indices = @transform_7, window_bounds = array<i64: 1, 4, 256>}]} {
    %0 = tpu.iota {dimensions = array<i32: 1>} : vector<1x256xi32>
    %c16_i32 = arith.constant 16 : i32
    %c0_i32 = arith.constant 0 : i32
    %1 = arith.cmpi eq, %c16_i32, %c0_i32 : i32
    %c1_i32 = arith.constant 1 : i32
    %2 = arith.select %1, %c1_i32, %c16_i32 : i32
    %3 = vector.broadcast %2 : i32 to vector<1x256xi32>
    %4 = arith.remsi %0, %3 : vector<1x256xi32>
    %c0_i32_0 = arith.constant 0 : i32
    %5 = vector.broadcast %c0_i32_0 : i32 to vector<1x256xi32>
    %6 = arith.cmpi ne, %4, %5 : vector<1x256xi32>
    %c0_i32_1 = arith.constant 0 : i32
    %7 = vector.broadcast %c0_i32_1 : i32 to vector<1x256xi32>
    %8 = arith.cmpi slt, %4, %7 : vector<1x256xi32>
    %c0_i32_2 = arith.constant 0 : i32
    %9 = arith.cmpi slt, %2, %c0_i32_2 : i32
    %10 = vector.broadcast %9 : i1 to vector<1x256xi1>
    %11 = vector.broadcast %10 : vector<1x256xi1> to vector<1x256xi1>
    %12 = arith.xori %8, %11 : vector<1x256xi1>
    %13 = arith.andi %12, %6 : vector<1x256xi1>
    %14 = vector.broadcast %2 : i32 to vector<1x256xi32>
    %15 = arith.addi %4, %14 : vector<1x256xi32>
    %16 = arith.select %13, %15, %4 : vector<1x256xi1>, vector<1x256xi32>
    %c1_i32_3 = arith.constant 1 : i32
    %17 = vector.broadcast %c1_i32_3 : i32 to vector<1x256xi32>
    %18 = arith.cmpi sge, %16, %17 : vector<1x256xi32>
    %c15_i32 = arith.constant 15 : i32
    %19 = vector.broadcast %c15_i32 : i32 to vector<1x256xi32>
    %20 = arith.cmpi slt, %16, %19 : vector<1x256xi32>
    %21 = vector.shape_cast %18 : vector<1x256xi1> to vector<1x256xi1>
    %22 = vector.broadcast %21 : vector<1x256xi1> to vector<3x256xi1>
    %23 = vector.shape_cast %20 : vector<1x256xi1> to vector<1x256xi1>
    %24 = vector.broadcast %23 : vector<1x256xi1> to vector<3x256xi1>
    %25 = vector.shape_cast %18 : vector<1x256xi1> to vector<1x256xi1>
    %26 = vector.broadcast %25 : vector<1x256xi1> to vector<4x256xi1>
    %27 = vector.shape_cast %20 : vector<1x256xi1> to vector<1x256xi1>
    %28 = vector.broadcast %27 : vector<1x256xi1> to vector<4x256xi1>
    %cst = arith.constant 0.000000e+00 : f32
    %29 = vector.broadcast %cst : f32 to vector<3x128xf32>
    %c0 = arith.constant 0 : index
    %c0_4 = arith.constant 0 : index
    %30 = vector.load %arg9[%c0, %c0_4] : memref<3x512xf32, #tpu.memory_space<vmem>>, vector<3x128xf32>
    tpu.vector_store %arg9[%c0, %c0_4], %29 {strides = array<i32>} : memref<3x512xf32, #tpu.memory_space<vmem>>, vector<3x128xf32>,
    %cst_5 = arith.constant 0.000000e+00 : f32
    %31 = vector.broadcast %cst_5 : f32 to vector<3x128xf32>
    %c0_6 = arith.constant 0 : index
    %c384 = arith.constant 384 : index
    %32 = vector.load %arg9[%c0_6, %c384] : memref<3x512xf32, #tpu.memory_space<vmem>>, vector<3x128xf32>
    tpu.vector_store %arg9[%c0_6, %c384], %31 {strides = array<i32>} : memref<3x512xf32, #tpu.memory_space<vmem>>, vector<3x128xf32>,
    %cst_7 = arith.constant 0.000000e+00 : f32
    %33 = vector.broadcast %cst_7 : f32 to vector<4x128xf32>
    %c0_8 = arith.constant 0 : index
    %c0_9 = arith.constant 0 : index
    %34 = vector.load %arg10[%c0_8, %c0_9] : memref<4x512xf32, #tpu.memory_space<vmem>>, vector<4x128xf32>
    tpu.vector_store %arg10[%c0_8, %c0_9], %33 {strides = array<i32>} : memref<4x512xf32, #tpu.memory_space<vmem>>, vector<4x128xf32>,
    %cst_10 = arith.constant 0.000000e+00 : f32
    %35 = vector.broadcast %cst_10 : f32 to vector<4x128xf32>
    %c0_11 = arith.constant 0 : index
    %c384_12 = arith.constant 384 : index
    %36 = vector.load %arg10[%c0_11, %c384_12] : memref<4x512xf32, #tpu.memory_space<vmem>>, vector<4x128xf32>
    tpu.vector_store %arg10[%c0_11, %c384_12], %35 {strides = array<i32>} : memref<4x512xf32, #tpu.memory_space<vmem>>, vector<4x128xf32>,
    %c0_i32_13 = arith.constant 0 : i32
    "tpu.region"() ({
      %176 = tpu.sem_alloc : memref<!tpu.dma_semaphore, #tpu.memory_space<semaphore_mem>>
      %c0_i32_137 = arith.constant 0 : i32
      %c0_i32_138 = arith.constant 0 : i32
      %177 = tpu.memref_slice %arg1[%c0_i32_13, %c0_i32_137, %c0_i32_138] : memref<1x3x256xf32, #tpu.memory_space<vmem>> -> memref<1x3x256xf32, #tpu.memory_space<vmem>>
      %178 = tpu.memref_squeeze %177 : memref<1x3x256xf32, #tpu.memory_space<vmem>> -> memref<3x256xf32, #tpu.memory_space<vmem>>
      %c0_i32_139 = arith.constant 0 : i32
      %c128_i32 = arith.constant 128 : i32
      %179 = tpu.memref_slice %arg9[%c0_i32_139, %c128_i32] : memref<3x512xf32, #tpu.memory_space<vmem>> -> memref<3x256xf32, #tpu.memory_space<vmem>>
      tpu.enqueue_dma source(%178 : memref<3x256xf32, #tpu.memory_space<vmem>>) target(%179 : memref<3x256xf32, #tpu.memory_space<vmem>>) target_semaphore(%176 : memref<!tpu.dma_semaphore, #tpu.memory_space<semaphore_mem>>)
      %c0_i32_140 = arith.constant 0 : i32
      %c0_i32_141 = arith.constant 0 : i32
      %180 = tpu.memref_slice %arg1[%c0_i32_13, %c0_i32_140, %c0_i32_141] : memref<1x3x256xf32, #tpu.memory_space<vmem>> -> memref<1x3x256xf32, #tpu.memory_space<vmem>>
      %181 = tpu.memref_squeeze %180 : memref<1x3x256xf32, #tpu.memory_space<vmem>> -> memref<3x256xf32, #tpu.memory_space<vmem>>
      %c0_i32_142 = arith.constant 0 : i32
      %c128_i32_143 = arith.constant 128 : i32
      %182 = tpu.memref_slice %arg9[%c0_i32_142, %c128_i32_143] : memref<3x512xf32, #tpu.memory_space<vmem>> -> memref<3x256xf32, #tpu.memory_space<vmem>>
      tpu.wait_dma2 semaphore(%176 : memref<!tpu.dma_semaphore, #tpu.memory_space<semaphore_mem>>) src(%181 : memref<3x256xf32, #tpu.memory_space<vmem>>) dst(%182 : memref<3x256xf32, #tpu.memory_space<vmem>>)
      tpu.yield
    }) : () -> ()
    %c0_14 = arith.constant 0 : index
    %c111 = arith.constant 111 : index
    %37 = vector.load %arg9[%c0_14, %c111] : memref<3x512xf32, #tpu.memory_space<vmem>>, vector<3x256xf32>
    %cst_15 = arith.constant 0.000000e+00 : f32
    %38 = vector.broadcast %cst_15 : f32 to vector<3x256xf32>
    %39 = arith.select %22, %37, %38 : vector<3x256xi1>, vector<3x256xf32>
    %c0_16 = arith.constant 0 : index
    %c0_17 = arith.constant 0 : index
    %c0_18 = arith.constant 0 : index
    %40 = vector.load %arg2[%c0_16, %c0_17, %c0_18] : memref<9x4x3xf32, #tpu.memory_space<vmem>>, vector<1x4x3xf32>
    %41 = vector.shape_cast %40 : vector<1x4x3xf32> to vector<4x3xf32>
    %cst_19 = arith.constant dense<0.000000e+00> : vector<4x256xf32>
    %42 = tpu.matmul %41, %39, %cst_19 {dimension_numbers = #tpu.dot_dimension_numbers<[1], [0], [0], [1], [0, 0, 1, 1], [], []>} : vector<4x3xf32>, vector<3x256xf32>, vector<4x256xf32> -> vector<4x256xf32>
    %c0_20 = arith.constant 0 : index
    %c112 = arith.constant 112 : index
    %43 = vector.load %arg9[%c0_20, %c112] : memref<3x512xf32, #tpu.memory_space<vmem>>, vector<3x256xf32>
    %c1 = arith.constant 1 : index
    %c0_21 = arith.constant 0 : index
    %c0_22 = arith.constant 0 : index
    %44 = vector.load %arg2[%c1, %c0_21, %c0_22] : memref<9x4x3xf32, #tpu.memory_space<vmem>>, vector<1x4x3xf32>
    %45 = vector.shape_cast %44 : vector<1x4x3xf32> to vector<4x3xf32>
    %cst_23 = arith.constant dense<0.000000e+00> : vector<4x256xf32>
    %46 = tpu.matmul %45, %43, %cst_23 {dimension_numbers = #tpu.dot_dimension_numbers<[1], [0], [0], [1], [0, 0, 1, 1], [], []>} : vector<4x3xf32>, vector<3x256xf32>, vector<4x256xf32> -> vector<4x256xf32>
    %47 = arith.addf %42, %46 : vector<4x256xf32>
    %c0_24 = arith.constant 0 : index
    %c113 = arith.constant 113 : index
    %48 = vector.load %arg9[%c0_24, %c113] : memref<3x512xf32, #tpu.memory_space<vmem>>, vector<3x256xf32>
    %cst_25 = arith.constant 0.000000e+00 : f32
    %49 = vector.broadcast %cst_25 : f32 to vector<3x256xf32>
    %50 = arith.select %24, %48, %49 : vector<3x256xi1>, vector<3x256xf32>
    %c2 = arith.constant 2 : index
    %c0_26 = arith.constant 0 : index
    %c0_27 = arith.constant 0 : index
    %51 = vector.load %arg2[%c2, %c0_26, %c0_27] : memref<9x4x3xf32, #tpu.memory_space<vmem>>, vector<1x4x3xf32>
    %52 = vector.shape_cast %51 : vector<1x4x3xf32> to vector<4x3xf32>
    %cst_28 = arith.constant dense<0.000000e+00> : vector<4x256xf32>
    %53 = tpu.matmul %52, %50, %cst_28 {dimension_numbers = #tpu.dot_dimension_numbers<[1], [0], [0], [1], [0, 0, 1, 1], [], []>} : vector<4x3xf32>, vector<3x256xf32>, vector<4x256xf32> -> vector<4x256xf32>
    %54 = arith.addf %47, %53 : vector<4x256xf32>
    %c0_29 = arith.constant 0 : index
    %c127 = arith.constant 127 : index
    %55 = vector.load %arg9[%c0_29, %c127] : memref<3x512xf32, #tpu.memory_space<vmem>>, vector<3x256xf32>
    %cst_30 = arith.constant 0.000000e+00 : f32
    %56 = vector.broadcast %cst_30 : f32 to vector<3x256xf32>
    %57 = arith.select %22, %55, %56 : vector<3x256xi1>, vector<3x256xf32>
    %c3 = arith.constant 3 : index
    %c0_31 = arith.constant 0 : index
    %c0_32 = arith.constant 0 : index
    %58 = vector.load %arg2[%c3, %c0_31, %c0_32] : memref<9x4x3xf32, #tpu.memory_space<vmem>>, vector<1x4x3xf32>
    %59 = vector.shape_cast %58 : vector<1x4x3xf32> to vector<4x3xf32>
    %cst_33 = arith.constant dense<0.000000e+00> : vector<4x256xf32>
    %60 = tpu.matmul %59, %57, %cst_33 {dimension_numbers = #tpu.dot_dimension_numbers<[1], [0], [0], [1], [0, 0, 1, 1], [], []>} : vector<4x3xf32>, vector<3x256xf32>, vector<4x256xf32> -> vector<4x256xf32>
    %61 = arith.addf %54, %60 : vector<4x256xf32>
    %c0_34 = arith.constant 0 : index
    %c128 = arith.constant 128 : index
    %62 = vector.load %arg9[%c0_34, %c128] : memref<3x512xf32, #tpu.memory_space<vmem>>, vector<3x256xf32>
    %c4 = arith.constant 4 : index
    %c0_35 = arith.constant 0 : index
    %c0_36 = arith.constant 0 : index
    %63 = vector.load %arg2[%c4, %c0_35, %c0_36] : memref<9x4x3xf32, #tpu.memory_space<vmem>>, vector<1x4x3xf32>
    %64 = vector.shape_cast %63 : vector<1x4x3xf32> to vector<4x3xf32>
    %cst_37 = arith.constant dense<0.000000e+00> : vector<4x256xf32>
    %65 = tpu.matmul %64, %62, %cst_37 {dimension_numbers = #tpu.dot_dimension_numbers<[1], [0], [0], [1], [0, 0, 1, 1], [], []>} : vector<4x3xf32>, vector<3x256xf32>, vector<4x256xf32> -> vector<4x256xf32>
    %66 = arith.addf %61, %65 : vector<4x256xf32>
    %c0_38 = arith.constant 0 : index
    %c129 = arith.constant 129 : index
    %67 = vector.load %arg9[%c0_38, %c129] : memref<3x512xf32, #tpu.memory_space<vmem>>, vector<3x256xf32>
    %cst_39 = arith.constant 0.000000e+00 : f32
    %68 = vector.broadcast %cst_39 : f32 to vector<3x256xf32>
    %69 = arith.select %24, %67, %68 : vector<3x256xi1>, vector<3x256xf32>
    %c5 = arith.constant 5 : index
    %c0_40 = arith.constant 0 : index
    %c0_41 = arith.constant 0 : index
    %70 = vector.load %arg2[%c5, %c0_40, %c0_41] : memref<9x4x3xf32, #tpu.memory_space<vmem>>, vector<1x4x3xf32>
    %71 = vector.shape_cast %70 : vector<1x4x3xf32> to vector<4x3xf32>
    %cst_42 = arith.constant dense<0.000000e+00> : vector<4x256xf32>
    %72 = tpu.matmul %71, %69, %cst_42 {dimension_numbers = #tpu.dot_dimension_numbers<[1], [0], [0], [1], [0, 0, 1, 1], [], []>} : vector<4x3xf32>, vector<3x256xf32>, vector<4x256xf32> -> vector<4x256xf32>
    %73 = arith.addf %66, %72 : vector<4x256xf32>
    %c0_43 = arith.constant 0 : index
    %c143 = arith.constant 143 : index
    %74 = vector.load %arg9[%c0_43, %c143] : memref<3x512xf32, #tpu.memory_space<vmem>>, vector<3x256xf32>
    %cst_44 = arith.constant 0.000000e+00 : f32
    %75 = vector.broadcast %cst_44 : f32 to vector<3x256xf32>
    %76 = arith.select %22, %74, %75 : vector<3x256xi1>, vector<3x256xf32>
    %c6 = arith.constant 6 : index
    %c0_45 = arith.constant 0 : index
    %c0_46 = arith.constant 0 : index
    %77 = vector.load %arg2[%c6, %c0_45, %c0_46] : memref<9x4x3xf32, #tpu.memory_space<vmem>>, vector<1x4x3xf32>
    %78 = vector.shape_cast %77 : vector<1x4x3xf32> to vector<4x3xf32>
    %cst_47 = arith.constant dense<0.000000e+00> : vector<4x256xf32>
    %79 = tpu.matmul %78, %76, %cst_47 {dimension_numbers = #tpu.dot_dimension_numbers<[1], [0], [0], [1], [0, 0, 1, 1], [], []>} : vector<4x3xf32>, vector<3x256xf32>, vector<4x256xf32> -> vector<4x256xf32>
    %80 = arith.addf %73, %79 : vector<4x256xf32>
    %c0_48 = arith.constant 0 : index
    %c144 = arith.constant 144 : index
    %81 = vector.load %arg9[%c0_48, %c144] : memref<3x512xf32, #tpu.memory_space<vmem>>, vector<3x256xf32>
    %c7 = arith.constant 7 : index
    %c0_49 = arith.constant 0 : index
    %c0_50 = arith.constant 0 : index
    %82 = vector.load %arg2[%c7, %c0_49, %c0_50] : memref<9x4x3xf32, #tpu.memory_space<vmem>>, vector<1x4x3xf32>
    %83 = vector.shape_cast %82 : vector<1x4x3xf32> to vector<4x3xf32>
    %cst_51 = arith.constant dense<0.000000e+00> : vector<4x256xf32>
    %84 = tpu.matmul %83, %81, %cst_51 {dimension_numbers = #tpu.dot_dimension_numbers<[1], [0], [0], [1], [0, 0, 1, 1], [], []>} : vector<4x3xf32>, vector<3x256xf32>, vector<4x256xf32> -> vector<4x256xf32>
    %85 = arith.addf %80, %84 : vector<4x256xf32>
    %c0_52 = arith.constant 0 : index
    %c145 = arith.constant 145 : index
    %86 = vector.load %arg9[%c0_52, %c145] : memref<3x512xf32, #tpu.memory_space<vmem>>, vector<3x256xf32>
    %cst_53 = arith.constant 0.000000e+00 : f32
    %87 = vector.broadcast %cst_53 : f32 to vector<3x256xf32>
    %88 = arith.select %24, %86, %87 : vector<3x256xi1>, vector<3x256xf32>
    %c8 = arith.constant 8 : index
    %c0_54 = arith.constant 0 : index
    %c0_55 = arith.constant 0 : index
    %89 = vector.load %arg2[%c8, %c0_54, %c0_55] : memref<9x4x3xf32, #tpu.memory_space<vmem>>, vector<1x4x3xf32>
    %90 = vector.shape_cast %89 : vector<1x4x3xf32> to vector<4x3xf32>
    %cst_56 = arith.constant dense<0.000000e+00> : vector<4x256xf32>
    %91 = tpu.matmul %90, %88, %cst_56 {dimension_numbers = #tpu.dot_dimension_numbers<[1], [0], [0], [1], [0, 0, 1, 1], [], []>} : vector<4x3xf32>, vector<3x256xf32>, vector<4x256xf32> -> vector<4x256xf32>
    %92 = arith.addf %85, %91 : vector<4x256xf32>
    %c0_57 = arith.constant 0 : index
    %c0_58 = arith.constant 0 : index
    %93 = vector.load %arg3[%c0_57, %c0_58] : memref<4x1xf32, #tpu.memory_space<vmem>>, vector<4x1xf32>
    %94 = vector.broadcast %93 : vector<4x1xf32> to vector<4x256xf32>
    %95 = arith.addf %92, %94 : vector<4x256xf32>
    %c0_59 = arith.constant 0 : index
    %c128_60 = arith.constant 128 : index
    %96 = vector.load %arg10[%c0_59, %c128_60] : memref<4x512xf32, #tpu.memory_space<vmem>>, vector<4x256xf32>
    tpu.vector_store %arg10[%c0_59, %c128_60], %95 {strides = array<i32>} : memref<4x512xf32, #tpu.memory_space<vmem>>, vector<4x256xf32>,
    %c0_61 = arith.constant 0 : index
    %c111_62 = arith.constant 111 : index
    %97 = vector.load %arg10[%c0_61, %c111_62] : memref<4x512xf32, #tpu.memory_space<vmem>>, vector<4x256xf32>
    %cst_63 = arith.constant 0.000000e+00 : f32
    %98 = vector.broadcast %cst_63 : f32 to vector<4x256xf32>
    %99 = arith.select %26, %97, %98 : vector<4x256xi1>, vector<4x256xf32>
    %c0_64 = arith.constant 0 : index
    %c0_65 = arith.constant 0 : index
    %c0_66 = arith.constant 0 : index
    %100 = vector.load %arg4[%c0_64, %c0_65, %c0_66] : memref<9x4x4xf32, #tpu.memory_space<vmem>>, vector<1x4x4xf32>
    %101 = vector.shape_cast %100 : vector<1x4x4xf32> to vector<4x4xf32>
    %cst_67 = arith.constant dense<0.000000e+00> : vector<4x256xf32>
    %102 = tpu.matmul %101, %99, %cst_67 {dimension_numbers = #tpu.dot_dimension_numbers<[1], [0], [0], [1], [0, 0, 1, 1], [], []>} : vector<4x4xf32>, vector<4x256xf32>, vector<4x256xf32> -> vector<4x256xf32>
    %c0_68 = arith.constant 0 : index
    %c112_69 = arith.constant 112 : index
    %103 = vector.load %arg10[%c0_68, %c112_69] : memref<4x512xf32, #tpu.memory_space<vmem>>, vector<4x256xf32>
    %c1_70 = arith.constant 1 : index
    %c0_71 = arith.constant 0 : index
    %c0_72 = arith.constant 0 : index
    %104 = vector.load %arg4[%c1_70, %c0_71, %c0_72] : memref<9x4x4xf32, #tpu.memory_space<vmem>>, vector<1x4x4xf32>
    %105 = vector.shape_cast %104 : vector<1x4x4xf32> to vector<4x4xf32>
    %cst_73 = arith.constant dense<0.000000e+00> : vector<4x256xf32>
    %106 = tpu.matmul %105, %103, %cst_73 {dimension_numbers = #tpu.dot_dimension_numbers<[1], [0], [0], [1], [0, 0, 1, 1], [], []>} : vector<4x4xf32>, vector<4x256xf32>, vector<4x256xf32> -> vector<4x256xf32>
    %107 = arith.addf %102, %106 : vector<4x256xf32>
    %c0_74 = arith.constant 0 : index
    %c113_75 = arith.constant 113 : index
    %108 = vector.load %arg10[%c0_74, %c113_75] : memref<4x512xf32, #tpu.memory_space<vmem>>, vector<4x256xf32>
    %cst_76 = arith.constant 0.000000e+00 : f32
    %109 = vector.broadcast %cst_76 : f32 to vector<4x256xf32>
    %110 = arith.select %28, %108, %109 : vector<4x256xi1>, vector<4x256xf32>
    %c2_77 = arith.constant 2 : index
    %c0_78 = arith.constant 0 : index
    %c0_79 = arith.constant 0 : index
    %111 = vector.load %arg4[%c2_77, %c0_78, %c0_79] : memref<9x4x4xf32, #tpu.memory_space<vmem>>, vector<1x4x4xf32>
    %112 = vector.shape_cast %111 : vector<1x4x4xf32> to vector<4x4xf32>
    %cst_80 = arith.constant dense<0.000000e+00> : vector<4x256xf32>
    %113 = tpu.matmul %112, %110, %cst_80 {dimension_numbers = #tpu.dot_dimension_numbers<[1], [0], [0], [1], [0, 0, 1, 1], [], []>} : vector<4x4xf32>, vector<4x256xf32>, vector<4x256xf32> -> vector<4x256xf32>
    %114 = arith.addf %107, %113 : vector<4x256xf32>
    %c0_81 = arith.constant 0 : index
    %c127_82 = arith.constant 127 : index
    %115 = vector.load %arg10[%c0_81, %c127_82] : memref<4x512xf32, #tpu.memory_space<vmem>>, vector<4x256xf32>
    %cst_83 = arith.constant 0.000000e+00 : f32
    %116 = vector.broadcast %cst_83 : f32 to vector<4x256xf32>
    %117 = arith.select %26, %115, %116 : vector<4x256xi1>, vector<4x256xf32>
    %c3_84 = arith.constant 3 : index
    %c0_85 = arith.constant 0 : index
    %c0_86 = arith.constant 0 : index
    %118 = vector.load %arg4[%c3_84, %c0_85, %c0_86] : memref<9x4x4xf32, #tpu.memory_space<vmem>>, vector<1x4x4xf32>
    %119 = vector.shape_cast %118 : vector<1x4x4xf32> to vector<4x4xf32>
    %cst_87 = arith.constant dense<0.000000e+00> : vector<4x256xf32>
    %120 = tpu.matmul %119, %117, %cst_87 {dimension_numbers = #tpu.dot_dimension_numbers<[1], [0], [0], [1], [0, 0, 1, 1], [], []>} : vector<4x4xf32>, vector<4x256xf32>, vector<4x256xf32> -> vector<4x256xf32>
    %121 = arith.addf %114, %120 : vector<4x256xf32>
    %c0_88 = arith.constant 0 : index
    %c128_89 = arith.constant 128 : index
    %122 = vector.load %arg10[%c0_88, %c128_89] : memref<4x512xf32, #tpu.memory_space<vmem>>, vector<4x256xf32>
    %c4_90 = arith.constant 4 : index
    %c0_91 = arith.constant 0 : index
    %c0_92 = arith.constant 0 : index
    %123 = vector.load %arg4[%c4_90, %c0_91, %c0_92] : memref<9x4x4xf32, #tpu.memory_space<vmem>>, vector<1x4x4xf32>
    %124 = vector.shape_cast %123 : vector<1x4x4xf32> to vector<4x4xf32>
    %cst_93 = arith.constant dense<0.000000e+00> : vector<4x256xf32>
    %125 = tpu.matmul %124, %122, %cst_93 {dimension_numbers = #tpu.dot_dimension_numbers<[1], [0], [0], [1], [0, 0, 1, 1], [], []>} : vector<4x4xf32>, vector<4x256xf32>, vector<4x256xf32> -> vector<4x256xf32>
    %126 = arith.addf %121, %125 : vector<4x256xf32>
    %c0_94 = arith.constant 0 : index
    %c129_95 = arith.constant 129 : index
    %127 = vector.load %arg10[%c0_94, %c129_95] : memref<4x512xf32, #tpu.memory_space<vmem>>, vector<4x256xf32>
    %cst_96 = arith.constant 0.000000e+00 : f32
    %128 = vector.broadcast %cst_96 : f32 to vector<4x256xf32>
    %129 = arith.select %28, %127, %128 : vector<4x256xi1>, vector<4x256xf32>
    %c5_97 = arith.constant 5 : index
    %c0_98 = arith.constant 0 : index
    %c0_99 = arith.constant 0 : index
    %130 = vector.load %arg4[%c5_97, %c0_98, %c0_99] : memref<9x4x4xf32, #tpu.memory_space<vmem>>, vector<1x4x4xf32>
    %131 = vector.shape_cast %130 : vector<1x4x4xf32> to vector<4x4xf32>
    %cst_100 = arith.constant dense<0.000000e+00> : vector<4x256xf32>
    %132 = tpu.matmul %131, %129, %cst_100 {dimension_numbers = #tpu.dot_dimension_numbers<[1], [0], [0], [1], [0, 0, 1, 1], [], []>} : vector<4x4xf32>, vector<4x256xf32>, vector<4x256xf32> -> vector<4x256xf32>
    %133 = arith.addf %126, %132 : vector<4x256xf32>
    %c0_101 = arith.constant 0 : index
    %c143_102 = arith.constant 143 : index
    %134 = vector.load %arg10[%c0_101, %c143_102] : memref<4x512xf32, #tpu.memory_space<vmem>>, vector<4x256xf32>
    %cst_103 = arith.constant 0.000000e+00 : f32
    %135 = vector.broadcast %cst_103 : f32 to vector<4x256xf32>
    %136 = arith.select %26, %134, %135 : vector<4x256xi1>, vector<4x256xf32>
    %c6_104 = arith.constant 6 : index
    %c0_105 = arith.constant 0 : index
    %c0_106 = arith.constant 0 : index
    %137 = vector.load %arg4[%c6_104, %c0_105, %c0_106] : memref<9x4x4xf32, #tpu.memory_space<vmem>>, vector<1x4x4xf32>
    %138 = vector.shape_cast %137 : vector<1x4x4xf32> to vector<4x4xf32>
    %cst_107 = arith.constant dense<0.000000e+00> : vector<4x256xf32>
    %139 = tpu.matmul %138, %136, %cst_107 {dimension_numbers = #tpu.dot_dimension_numbers<[1], [0], [0], [1], [0, 0, 1, 1], [], []>} : vector<4x4xf32>, vector<4x256xf32>, vector<4x256xf32> -> vector<4x256xf32>
    %140 = arith.addf %133, %139 : vector<4x256xf32>
    %c0_108 = arith.constant 0 : index
    %c144_109 = arith.constant 144 : index
    %141 = vector.load %arg10[%c0_108, %c144_109] : memref<4x512xf32, #tpu.memory_space<vmem>>, vector<4x256xf32>
    %c7_110 = arith.constant 7 : index
    %c0_111 = arith.constant 0 : index
    %c0_112 = arith.constant 0 : index
    %142 = vector.load %arg4[%c7_110, %c0_111, %c0_112] : memref<9x4x4xf32, #tpu.memory_space<vmem>>, vector<1x4x4xf32>
    %143 = vector.shape_cast %142 : vector<1x4x4xf32> to vector<4x4xf32>
    %cst_113 = arith.constant dense<0.000000e+00> : vector<4x256xf32>
    %144 = tpu.matmul %143, %141, %cst_113 {dimension_numbers = #tpu.dot_dimension_numbers<[1], [0], [0], [1], [0, 0, 1, 1], [], []>} : vector<4x4xf32>, vector<4x256xf32>, vector<4x256xf32> -> vector<4x256xf32>
    %145 = arith.addf %140, %144 : vector<4x256xf32>
    %c0_114 = arith.constant 0 : index
    %c145_115 = arith.constant 145 : index
    %146 = vector.load %arg10[%c0_114, %c145_115] : memref<4x512xf32, #tpu.memory_space<vmem>>, vector<4x256xf32>
    %cst_116 = arith.constant 0.000000e+00 : f32
    %147 = vector.broadcast %cst_116 : f32 to vector<4x256xf32>
    %148 = arith.select %28, %146, %147 : vector<4x256xi1>, vector<4x256xf32>
    %c8_117 = arith.constant 8 : index
    %c0_118 = arith.constant 0 : index
    %c0_119 = arith.constant 0 : index
    %149 = vector.load %arg4[%c8_117, %c0_118, %c0_119] : memref<9x4x4xf32, #tpu.memory_space<vmem>>, vector<1x4x4xf32>
    %150 = vector.shape_cast %149 : vector<1x4x4xf32> to vector<4x4xf32>
    %cst_120 = arith.constant dense<0.000000e+00> : vector<4x256xf32>
    %151 = tpu.matmul %150, %148, %cst_120 {dimension_numbers = #tpu.dot_dimension_numbers<[1], [0], [0], [1], [0, 0, 1, 1], [], []>} : vector<4x4xf32>, vector<4x256xf32>, vector<4x256xf32> -> vector<4x256xf32>
    %152 = arith.addf %145, %151 : vector<4x256xf32>
    %c0_121 = arith.constant 0 : index
    %c0_122 = arith.constant 0 : index
    %153 = vector.load %arg5[%c0_121, %c0_122] : memref<4x1xf32, #tpu.memory_space<vmem>>, vector<4x1xf32>
    %154 = vector.broadcast %153 : vector<4x1xf32> to vector<4x256xf32>
    %155 = arith.addf %152, %154 : vector<4x256xf32>
    %cst_123 = arith.constant 0.000000e+00 : f32
    %156 = vector.broadcast %cst_123 : f32 to vector<4x256xf32>
    %157 = arith.cmpf oge, %155, %156 : vector<4x256xf32>
    %cst_124 = arith.constant 0.00999999977 : f32
    %158 = vector.broadcast %cst_124 : f32 to vector<4x256xf32>
    %159 = arith.mulf %158, %155 : vector<4x256xf32>
    %160 = arith.select %157, %155, %159 : vector<4x256xi1>, vector<4x256xf32>
    %c0_125 = arith.constant 0 : index
    %c0_126 = arith.constant 0 : index
    %161 = vector.load %arg6[%c0_125, %c0_126] : memref<4x4xf32, #tpu.memory_space<vmem>>, vector<4x4xf32>
    %cst_127 = arith.constant dense<0.000000e+00> : vector<4x256xf32>
    %162 = tpu.matmul %161, %160, %cst_127 {dimension_numbers = #tpu.dot_dimension_numbers<[1], [0], [0], [1], [0, 0, 1, 1], [], []>} : vector<4x4xf32>, vector<4x256xf32>, vector<4x256xf32> -> vector<4x256xf32>
    %c0_128 = arith.constant 0 : index
    %c0_129 = arith.constant 0 : index
    %163 = vector.load %arg7[%c0_128, %c0_129] : memref<4x1xf32, #tpu.memory_space<vmem>>, vector<4x1xf32>
    %164 = vector.broadcast %163 : vector<4x1xf32> to vector<4x256xf32>
    %165 = arith.addf %162, %164 : vector<4x256xf32>
    %cst_130 = arith.constant 0.000000e+00 : f32
    %166 = vector.broadcast %cst_130 : f32 to vector<4x256xf32>
    %167 = arith.cmpf oge, %165, %166 : vector<4x256xf32>
    %cst_131 = arith.constant 0.00999999977 : f32
    %168 = vector.broadcast %cst_131 : f32 to vector<4x256xf32>
    %169 = arith.mulf %168, %165 : vector<4x256xf32>
    %170 = arith.select %167, %165, %169 : vector<4x256xi1>, vector<4x256xf32>
    %c0_132 = arith.constant 0 : index
    %c128_133 = arith.constant 128 : index
    %171 = vector.load %arg10[%c0_132, %c128_133] : memref<4x512xf32, #tpu.memory_space<vmem>>, vector<4x256xf32>
    %172 = arith.addf %170, %171 : vector<4x256xf32>
    %c0_134 = arith.constant 0 : index
    %c0_135 = arith.constant 0 : index
    %c0_136 = arith.constant 0 : index
    %173 = vector.load %arg8[%c0_134, %c0_135, %c0_136] : memref<1x4x256xf32, #tpu.memory_space<vmem>>, vector<1x4x256xf32>
    %174 = vector.shape_cast %173 : vector<1x4x256xf32> to vector<4x256xf32>
    %175 = vector.shape_cast %172 : vector<4x256xf32> to vector<1x4x256xf32>
    tpu.vector_store %arg8[%c0_134, %c0_135, %c0_136], %175 {strides = array<i32>} : memref<1x4x256xf32, #tpu.memory_space<vmem>>, vector<1x4x256xf32>,
    return
  }
  func.func @transform_0(%arg0: i32) -> (i32, i32, i32) {
    %c0_i32 = arith.constant 0 : i32
    %c0_i32_0 = arith.constant 0 : i32
    %c0_i32_1 = arith.constant 0 : i32
    return %arg0, %c0_i32, %c0_i32_0 : i32, i32, i32
  }
  func.func @transform_1(%arg0: i32) -> (i32, i32, i32) {
    %c0_i32 = arith.constant 0 : i32
    %c0_i32_0 = arith.constant 0 : i32
    %c0_i32_1 = arith.constant 0 : i32
    %c0_i32_2 = arith.constant 0 : i32
    return %c0_i32, %c0_i32_0, %c0_i32_1 : i32, i32, i32
  }
  func.func @transform_2(%arg0: i32) -> (i32, i32) {
    %c0_i32 = arith.constant 0 : i32
    %c0_i32_0 = arith.constant 0 : i32
    %c0_i32_1 = arith.constant 0 : i32
    return %c0_i32, %c0_i32_0 : i32, i32
  }
  func.func @transform_3(%arg0: i32) -> (i32, i32, i32) {
    %c0_i32 = arith.constant 0 : i32
    %c0_i32_0 = arith.constant 0 : i32
    %c0_i32_1 = arith.constant 0 : i32
    %c0_i32_2 = arith.constant 0 : i32
    return %c0_i32, %c0_i32_0, %c0_i32_1 : i32, i32, i32
  }
  func.func @transform_4(%arg0: i32) -> (i32, i32) {
    %c0_i32 = arith.constant 0 : i32
    %c0_i32_0 = arith.constant 0 : i32
    %c0_i32_1 = arith.constant 0 : i32
    return %c0_i32, %c0_i32_0 : i32, i32
  }
  func.func @transform_5(%arg0: i32) -> (i32, i32) {
    %c0_i32 = arith.constant 0 : i32
    %c0_i32_0 = arith.constant 0 : i32
    %c0_i32_1 = arith.constant 0 : i32
    return %c0_i32, %c0_i32_0 : i32, i32
  }
  func.func @transform_6(%arg0: i32) -> (i32, i32) {
    %c0_i32 = arith.constant 0 : i32
    %c0_i32_0 = arith.constant 0 : i32
    %c0_i32_1 = arith.constant 0 : i32
    return %c0_i32, %c0_i32_0 : i32, i32
  }
  func.func @transform_7(%arg0: i32) -> (i32, i32, i32) {
    %c0_i32 = arith.constant 0 : i32
    %c0_i32_0 = arith.constant 0 : i32
    %c0_i32_1 = arith.constant 0 : i32
    return %arg0, %c0_i32, %c0_i32_0 : i32, i32, i32
  }
}

</mosaic_0001>

<llo_original>
// kernel: tpu_custom_call.1
$region0: #{tpu_custom_call.1}
  #allocation0 [shape = 'u32[]', space=smem, size = 0x4, offset = 0x4, fixed_abs, tag = 'smem constant byte address 0x4 - core index']
  #allocation1 [shape = 'u32[144,128]{1,0:T(1,128)}', space=vmem, size = 0x12000, scoped, tag = 'internal scratch']
  #allocation2 [shape = 'f32[3,512]{1,0:T(4,128)}', space=vmem, size = 0x2000, scoped, tag = 'scratch operand']
  #allocation3 [shape = 'f32[4,512]{1,0:T(4,128)}', space=vmem, size = 0x2000, scoped, tag = 'scratch operand']
  #allocation7 [shape = 's32[]', space=sflag, size = 0x4, offset = 0, fixed_abs, tag = 'sflag constant byte address 0x0 - dummy sync flag']
  %s0 = inlined_call_operand.vmem [shape: f32[2,3,256], index: 0, kind: input, shape index: {}]
  %s1 = inlined_call_operand.vmem [shape: f32[9,4,3], index: 1, kind: input, shape index: {}]
  %s2 = inlined_call_operand.vmem [shape: f32[4,1], index: 2, kind: input, shape index: {}]
  %s3 = inlined_call_operand.vmem [shape: f32[9,4,4], index: 3, kind: input, shape index: {}]
  %s4 = inlined_call_operand.vmem [shape: f32[4,1], index: 4, kind: input, shape index: {}]
  %s5 = inlined_call_operand.vmem [shape: f32[4,4], index: 5, kind: input, shape index: {}]
  %s6 = inlined_call_operand.vmem [shape: f32[4,1], index: 6, kind: input, shape index: {}]
  %s7 = inlined_call_operand.hbm [shape: f32[2,4,256], index: 7, kind: output, shape index: {}]
  %s8 = sld [smem:[#allocation0]]
  $region96: #{tpu_custom_call.1} parent=0
    _
  %s10 = ssub.s32 1, %s8
  %s11 = scalar_select 0, %s10, %s8
  $region1: #{tpu_custom_call.1} parent=0
    #allocation4 [shape = 'u8[8192]{0}', space=vmem, size = 0x2000, scoped, tag = 'output window, operand 0']
    #allocation5 [shape = 's32[2]{0}', space=sflag, size = 0x8, scoped, tag = 'scoped memory for tpu_custom_call.1']
    %12 = vsyncpa [#allocation5], 0
    %s13 = scalar_lea.sflag [#allocation5], 1
    %14 = vsyncpa %s13, 0
    loop: start=0, step=1, limit=4
    $region2: #{tpu_custom_call.1} parent=1 // loop_pre_header
      _
    $region3: #{tpu_custom_call.1} parent=1 // loop_header
      %s16 = sphi 0, %s20
      %p17 = scmp.ge.s32.totalorder %s16, 4
      %s26 = sphi 0, %s28
      %s29 = sphi 0, %s26
      %s30 = sphi 0, %s29
      %s46 = sphi 0, %s30
      %s50 = sphi 0, %s50
      %s52 = sphi 0, %s50
      %s53 = sphi 0, %s52
      %s67 = sphi 0, %s53
      %s71 = sphi 0, %s71
      %s73 = sphi 0, %s71
      %s74 = sphi 0, %s73
      %s88 = sphi 0, %s74
      %s92 = sphi 0, %s92
      %s94 = sphi 0, %s92
      %s95 = sphi 0, %s94
      %s109 = sphi 0, %s95
      %s113 = sphi 0, %s113
      %s115 = sphi 0, %s113
      %s116 = sphi 0, %s115
      %s130 = sphi 0, %s116
      %s134 = sphi 0, %s134
      %s136 = sphi 0, %s134
      %s137 = sphi 0, %s136
      %s151 = sphi 0, %s137
      %s155 = sphi 0, %s155
      %s157 = sphi 0, %s155
      %s158 = sphi 0, %s157
      %s172 = sphi 0, %s158
      %s178 = sphi 0, %s180
      %s181 = sphi 0, %s178
      %s182 = sphi 0, %s181
      %s198 = sphi 0, %s182
    $region4: #{tpu_custom_call.1} parent=1 // loop_header_branch
      %19 = sbr.rel (%p17) target = $region8
    $region5: #{tpu_custom_call.1} parent=1 // loop_body
      %s21 = ssub.s32 %s16, 1
      %s22 = ssub.s32 %s16, 2
      %s23 = sadd.s32 %s16, 1
      %s24 = ssub.s32 %s16, %s23
      %p25 = scmp.eq.s32.totalorder %s24, 0
      %s27 = sadd.s32 %s26, 1
      %s28 = scalar_select %p25, %s26, %s27
      %p31 = pneg %p25
      %p32 = scmp.eq.s32.totalorder %s16, 1
      %p33 = por %p31, %p32
      %p34 = scmp.ne.s32.totalorder %s26, %s29
      %p35 = scmp.eq.s32.totalorder %s16, 0
      %p36 = por %p34, %p35
      %p37 = scmp.ne.s32.totalorder %s26, %s29
      %p38 = scmp.eq.s32.totalorder %s21, 1
      %p39 = por %p37, %p38
      %p40 = scmp.ne.s32.totalorder %s29, %s30
      %p41 = scmp.eq.s32.totalorder %s21, 0
      %p42 = por %p40, %p41
      %p43 = scmp.ne.s32.totalorder %s29, %s30
      %p44 = scmp.eq.s32.totalorder %s22, 1
      %p45 = por %p43, %p44
      %p47 = scmp.ne.s32.totalorder %s30, %s46
      %p48 = scmp.eq.s32.totalorder %s22, 0
      %p49 = por %p47, %p48
      %s51 = sadd.s32 %s50, 1
      %p54 = scmp.eq.s32.totalorder %s16, 1
      %p55 = scmp.ne.s32.totalorder %s50, %s52
      %p56 = scmp.eq.s32.totalorder %s16, 0
      %p57 = por %p55, %p56
      %p58 = scmp.ne.s32.totalorder %s50, %s52
      %p59 = scmp.eq.s32.totalorder %s21, 1
      %p60 = por %p58, %p59
      %p61 = scmp.ne.s32.totalorder %s52, %s53
      %p62 = scmp.eq.s32.totalorder %s21, 0
      %p63 = por %p61, %p62
      %p64 = scmp.ne.s32.totalorder %s52, %s53
      %p65 = scmp.eq.s32.totalorder %s22, 1
      %p66 = por %p64, %p65
      %p68 = scmp.ne.s32.totalorder %s53, %s67
      %p69 = scmp.eq.s32.totalorder %s22, 0
      %p70 = por %p68, %p69
      %s72 = sadd.s32 %s71, 1
      %p75 = scmp.eq.s32.totalorder %s16, 1
      %p76 = scmp.ne.s32.totalorder %s71, %s73
      %p77 = scmp.eq.s32.totalorder %s16, 0
      %p78 = por %p76, %p77
      %p79 = scmp.ne.s32.totalorder %s71, %s73
      %p80 = scmp.eq.s32.totalorder %s21, 1
      %p81 = por %p79, %p80
      %p82 = scmp.ne.s32.totalorder %s73, %s74
      %p83 = scmp.eq.s32.totalorder %s21, 0
      %p84 = por %p82, %p83
      %p85 = scmp.ne.s32.totalorder %s73, %s74
      %p86 = scmp.eq.s32.totalorder %s22, 1
      %p87 = por %p85, %p86
      %p89 = scmp.ne.s32.totalorder %s74, %s88
      %p90 = scmp.eq.s32.totalorder %s22, 0
      %p91 = por %p89, %p90
      %s93 = sadd.s32 %s92, 1
      %p96 = scmp.eq.s32.totalorder %s16, 1
      %p97 = scmp.ne.s32.totalorder %s92, %s94
      %p98 = scmp.eq.s32.totalorder %s16, 0
      %p99 = por %p97, %p98
      %p100 = scmp.ne.s32.totalorder %s92, %s94
      %p101 = scmp.eq.s32.totalorder %s21, 1
      %p102 = por %p100, %p101
      %p103 = scmp.ne.s32.totalorder %s94, %s95
      %p104 = scmp.eq.s32.totalorder %s21, 0
      %p105 = por %p103, %p104
      %p106 = scmp.ne.s32.totalorder %s94, %s95
      %p107 = scmp.eq.s32.totalorder %s22, 1
      %p108 = por %p106, %p107
      %p110 = scmp.ne.s32.totalorder %s95, %s109
      %p111 = scmp.eq.s32.totalorder %s22, 0
      %p112 = por %p110, %p111
      %s114 = sadd.s32 %s113, 1
      %p117 = scmp.eq.s32.totalorder %s16, 1
      %p118 = scmp.ne.s32.totalorder %s113, %s115
      %p119 = scmp.eq.s32.totalorder %s16, 0
      %p120 = por %p118, %p119
      %p121 = scmp.ne.s32.totalorder %s113, %s115
      %p122 = scmp.eq.s32.totalorder %s21, 1
      %p123 = por %p121, %p122
      %p124 = scmp.ne.s32.totalorder %s115, %s116
      %p125 = scmp.eq.s32.totalorder %s21, 0
      %p126 = por %p124, %p125
      %p127 = scmp.ne.s32.totalorder %s115, %s116
      %p128 = scmp.eq.s32.totalorder %s22, 1
      %p129 = por %p127, %p128
      %p131 = scmp.ne.s32.totalorder %s116, %s130
      %p132 = scmp.eq.s32.totalorder %s22, 0
      %p133 = por %p131, %p132
      %s135 = sadd.s32 %s134, 1
      %p138 = scmp.eq.s32.totalorder %s16, 1
      %p139 = scmp.ne.s32.totalorder %s134, %s136
      %p140 = scmp.eq.s32.totalorder %s16, 0
      %p141 = por %p139, %p140
      %p142 = scmp.ne.s32.totalorder %s134, %s136
      %p143 = scmp.eq.s32.totalorder %s21, 1
      %p144 = por %p142, %p143
      %p145 = scmp.ne.s32.totalorder %s136, %s137
      %p146 = scmp.eq.s32.totalorder %s21, 0
      %p147 = por %p145, %p146
      %p148 = scmp.ne.s32.totalorder %s136, %s137
      %p149 = scmp.eq.s32.totalorder %s22, 1
      %p150 = por %p148, %p149
      %p152 = scmp.ne.s32.totalorder %s137, %s151
      %p153 = scmp.eq.s32.totalorder %s22, 0
      %p154 = por %p152, %p153
      %s156 = sadd.s32 %s155, 1
      %p159 = scmp.eq.s32.totalorder %s16, 1
      %p160 = scmp.ne.s32.totalorder %s155, %s157
      %p161 = scmp.eq.s32.totalorder %s16, 0
      %p162 = por %p160, %p161
      %p163 = scmp.ne.s32.totalorder %s155, %s157
      %p164 = scmp.eq.s32.totalorder %s21, 1
      %p165 = por %p163, %p164
      %p166 = scmp.ne.s32.totalorder %s157, %s158
      %p167 = scmp.eq.s32.totalorder %s21, 0
      %p168 = por %p166, %p167
      %p169 = scmp.ne.s32.totalorder %s157, %s158
      %p170 = scmp.eq.s32.totalorder %s22, 1
      %p171 = por %p169, %p170
      %p173 = scmp.ne.s32.totalorder %s158, %s172
      %p174 = scmp.eq.s32.totalorder %s22, 0
      %p175 = por %p173, %p174
      %s176 = ssub.s32 %s16, %s23
      %p177 = scmp.eq.s32.totalorder %s176, 0
      %s179 = sadd.s32 %s178, 1
      %s180 = scalar_select %p177, %s178, %s179
      %p183 = pneg %p177
      %p184 = scmp.eq.s32.totalorder %s16, 1
      %p185 = por %p183, %p184
      %p186 = scmp.ne.s32.totalorder %s178, %s181
      %p187 = scmp.eq.s32.totalorder %s16, 0
      %p188 = por %p186, %p187
      %p189 = scmp.ne.s32.totalorder %s178, %s181
      %p190 = scmp.eq.s32.totalorder %s21, 1
      %p191 = por %p189, %p190
      %p192 = scmp.ne.s32.totalorder %s181, %s182
      %p193 = scmp.eq.s32.totalorder %s21, 0
      %p194 = por %p192, %p193
      %p195 = scmp.ne.s32.totalorder %s181, %s182
      %p196 = scmp.eq.s32.totalorder %s22, 1
      %p197 = por %p195, %p196
      %p199 = scmp.ne.s32.totalorder %s182, %s198
      %p200 = scmp.eq.s32.totalorder %s22, 0
      %p201 = por %p199, %p200
      %p202 = scmp.le.s32.totalorder 1, %s16
      %p203 = scmp.lt.s32.totalorder %s16, 3
      %p204 = pnand %p202, %p203
      %p205 = pneg %p204
      // Predicated region
      $region9: #{tpu_custom_call.1} parent=5 // pred_check
        _
      $region10: #{tpu_custom_call.1} parent=5 // pred_check_branch
        %207 = sbr.rel (%p204) target = $region12
      $region11: #{tpu_custom_call.1} parent=5 // pred_region
        %s208 = ssub.s32 %s16, 1
        // Predicated region
        $region13: #{tpu_custom_call.1} parent=11 // pred_check
          %p209 = pneg %p63
        $region14: #{tpu_custom_call.1} parent=11 // pred_check_branch
          %211 = sbr.rel (%p209) target = $region16
        $region15: #{tpu_custom_call.1} parent=11 // pred_region
          _
        $region16: #{tpu_custom_call.1} parent=11 // pred_fallthru
          _
        // Predicated region
        $region17: #{tpu_custom_call.1} parent=11 // pred_check
          %p212 = pneg %p84
        $region18: #{tpu_custom_call.1} parent=11 // pred_check_branch
          %214 = sbr.rel (%p212) target = $region20
        $region19: #{tpu_custom_call.1} parent=11 // pred_region
          _
        $region20: #{tpu_custom_call.1} parent=11 // pred_fallthru
          _
        // Predicated region
        $region21: #{tpu_custom_call.1} parent=11 // pred_check
          %p215 = pneg %p105
        $region22: #{tpu_custom_call.1} parent=11 // pred_check_branch
          %217 = sbr.rel (%p215) target = $region24
        $region23: #{tpu_custom_call.1} parent=11 // pred_region
          _
        $region24: #{tpu_custom_call.1} parent=11 // pred_fallthru
          _
        // Predicated region
        $region25: #{tpu_custom_call.1} parent=11 // pred_check
          %p218 = pneg %p126
        $region26: #{tpu_custom_call.1} parent=11 // pred_check_branch
          %220 = sbr.rel (%p218) target = $region28
        $region27: #{tpu_custom_call.1} parent=11 // pred_region
          _
        $region28: #{tpu_custom_call.1} parent=11 // pred_fallthru
          _
        // Predicated region
        $region29: #{tpu_custom_call.1} parent=11 // pred_check
          %p221 = pneg %p147
        $region30: #{tpu_custom_call.1} parent=11 // pred_check_branch
          %223 = sbr.rel (%p221) target = $region32
        $region31: #{tpu_custom_call.1} parent=11 // pred_region
          _
        $region32: #{tpu_custom_call.1} parent=11 // pred_fallthru
          _
        // Predicated region
        $region33: #{tpu_custom_call.1} parent=11 // pred_check
          %p224 = pneg %p168
        $region34: #{tpu_custom_call.1} parent=11 // pred_check_branch
          %226 = sbr.rel (%p224) target = $region36
        $region35: #{tpu_custom_call.1} parent=11 // pred_region
          _
        $region36: #{tpu_custom_call.1} parent=11 // pred_fallthru
          _
      $region12: #{tpu_custom_call.1} parent=5 // pred_fallthru
        _
      %p227 = scmp.lt.s32.totalorder %s16, 2
      // Predicated region
      $region37: #{tpu_custom_call.1} parent=5 // pred_check
        %p228 = pneg %p227
      $region38: #{tpu_custom_call.1} parent=5 // pred_check_branch
        %230 = sbr.rel (%p228) target = $region40
      $region39: #{tpu_custom_call.1} parent=5 // pred_region
        // Predicated region
        $region41: #{tpu_custom_call.1} parent=39 // pred_check
          %p231 = pneg %p36
        $region42: #{tpu_custom_call.1} parent=39 // pred_check_branch
          %233 = sbr.rel (%p231) target = $region44
        $region43: #{tpu_custom_call.1} parent=39 // pred_region
          %p234 = scmp.lt.s32.totalorder %s16, 1
          %s235 = scalar_select %p234, %s16, 1
          %s236 = smul.addr %s235, 2
          %s237 = smul.addr %s236, 4
          %s238 = scalar_lea.vmem %s0, %s237
        $region44: #{tpu_custom_call.1} parent=39 // pred_fallthru
          _
      $region40: #{tpu_custom_call.1} parent=5 // pred_fallthru
        _
      %p239 = scmp.le.s32.totalorder 1, %s16
      %p240 = scmp.lt.s32.totalorder %s16, 3
      %p241 = pnand %p239, %p240
      %p242 = pneg %p241
      // Predicated region
      $region45: #{tpu_custom_call.1} parent=5 // pred_check
        _
      $region46: #{tpu_custom_call.1} parent=5 // pred_check_branch
        %244 = sbr.rel (%p241) target = $region48
      $region47: #{tpu_custom_call.1} parent=5 // pred_region
        %s245 = ssub.s32 %s16, 1
        %p246 = scmp.lt.s32.totalorder %s21, 1
        %s247 = scalar_select %p246, %s21, 1
        %s248 = smul.addr %s247, 2
        %s249 = smul.addr %s248, 4
        %s250 = scalar_lea.vmem %s0, %s249
        %p251 = pneg %p42
        %p252 = pneg %p39
        %p253 = pneg %p63
        %p254 = pneg %p60
        %p255 = pneg %p84
        %p256 = pneg %p81
        %p257 = pneg %p105
        %p258 = pneg %p102
        %p259 = pneg %p126
        %p260 = pneg %p123
        %p261 = pneg %p147
        %p262 = pneg %p144
        %p263 = pneg %p168
        %p264 = pneg %p165
        %p265 = pneg %p194
        %p266 = pneg %p191
        %s267 = sand.u32 %s181, 1
        %s268 = scalar_lea.sflag [#allocation5], %s267
        %s269 = sand.u32 %s181, 1
        %s270 = smul.addr %s269, 8
        %s271 = scalar_lea.vmem [#allocation4], %s270
        %p272 = scmp.lt.s32.totalorder %s21, 1
        %s273 = scalar_select %p272, %s21, 1
        %s274 = smul.addr %s273, 2
        %s275 = smul.addr %s274, 4
        %s276 = scalar_lea.vmem %s0, %s275
        %v277 = vlaneseq
        %v278 = vand.u32 %v277, 127
        %v279 = vadd.s32 %v278, 128
        %vm280 = vcmp.lt.s32.totalorder %v278, 0
        %v281 = vsub.s32 0, %v278
        %v282 = vsel %vm280, %v281, %v278
        %v283 = vshrl.u32 %v282, 4
        %v284 = vand.u32 %v282, 15
        %v285 = vsub.s32 0, %v284
        %v286 = vsel %vm280, %v285, %v284
        %vm287 = vcmp.lt.s32.totalorder %v279, 0
        %v288 = vsub.s32 0, %v279
        %v289 = vsel %vm287, %v288, %v279
        %v290 = vshrl.u32 %v289, 4
        %v291 = vand.u32 %v289, 15
        %v292 = vsub.s32 0, %v291
        %v293 = vsel %vm287, %v292, %v291
        %vm294 = vcmp.ne.s32.totalorder %v286, 0
        %vm295 = vcmp.ne.s32.totalorder %v293, 0
        %vm296 = vcmp.lt.s32.totalorder %v286, 0
        %vm297 = vcmp.lt.s32.totalorder %v293, 0
        %vm298 = vmand %vm296, %vm294
        %vm299 = vmand %vm297, %vm295
        %v300 = vadd.s32 %v286, 16
        %v301 = vadd.s32 %v293, 16
        %v302 = vsel %vm298, %v300, %v286
        %v303 = vsel %vm299, %v301, %v293
        %vm304 = vcmp.ge.s32.totalorder %v302, 1
        %vm305 = vcmp.ge.s32.totalorder %v303, 1
        %vm306 = vcmp.lt.s32.totalorder %v302, 15
        %vm307 = vcmp.lt.s32.totalorder %v303, 15
        %v308 = vsel %vm304, 1, 0
        %v309 = vsel %vm305, 1, 0
        %vm310 = vcmp.eq.s32.totalorder %v308, 1
        %vm311 = vcmp.eq.s32.totalorder %v309, 1
        %v312 = vsel %vm306, 1, 0
        %v313 = vsel %vm307, 1, 0
        %vm314 = vcmp.eq.s32.totalorder %v312, 1
        %vm315 = vcmp.eq.s32.totalorder %v313, 1
        %316 = vst [vmem:[#allocation2] sm:$0x7] 0.0
        %317 = vst [vmem:[#allocation2 + $0xc] sm:$0x7] 0.0
        %318 = vst [vmem:[#allocation3] sm:$0xf] 0.0
        %319 = vst [vmem:[#allocation3 + $0xc] sm:$0xf] 0.0
        $region49: #{tpu_custom_call.1} parent=47
          #allocation6 [shape = 's32[1]{0}', space=sflag, size = 0x4, scoped, tag = 'scoped memory for tpu_custom_call.1']
          %s320 = scalar_lea.vmem [#allocation2], 4
          %p322 = scmp.lt.u32.totalorder 8, 8
          %p323 = pneg %p322
          // Predicated region
          $region50: #{tpu_custom_call.1} parent=49 // pred_check
            _
          $region51: #{tpu_custom_call.1} parent=49 // pred_check_branch
            %325 = sbr.rel (%p322) target = $region53
          $region52: #{tpu_custom_call.1} parent=49 // pred_region
            %s340 = sand.u32 8, 7
            %p341 = scmp.eq.s32.totalorder %s340, 0
            // Predicated region
            $region65: #{tpu_custom_call.1} parent=52 // pred_check
              %p342 = pneg %p341
            $region66: #{tpu_custom_call.1} parent=52 // pred_check_branch
              %344 = sbr.rel (%p342) target = $region68
            $region67: #{tpu_custom_call.1} parent=52 // pred_region
              loop: start=0, step=1, limit=1
              $region69: #{tpu_custom_call.1} parent=67 // loop_pre_header
                _
              $region70: #{tpu_custom_call.1} parent=67 // loop_header
                %s346 = sphi 0, %s350
                %p347 = scmp.ge.s32.totalorder %s346, 1
                %s351 = sphi %s276, %s276
                %s352 = sphi %s320, %s320
              $region71: #{tpu_custom_call.1} parent=67 // loop_header_branch
                %349 = sbr.rel (%p347) target = $region75
              $region72: #{tpu_custom_call.1} parent=67 // loop_body
                %v353 = vld [vmem:[%s351] sm:$0xff]
                %354 = vst [vmem:[%s352] sm:$0xff] %v353
              $region73: #{tpu_custom_call.1} parent=67 // loop_footer
                %s350 = sadd.s32 1, %s346
              $region74: #{tpu_custom_call.1} parent=67 // loop_footer_branch
                %345 = sbr.rel target = $region70
              $region75: #{tpu_custom_call.1} parent=67 // loop_exit
                _
            $region68: #{tpu_custom_call.1} parent=52 // pred_fallthru
              _
            %p355 = pneg %p341
            // Predicated region
            $region76: #{tpu_custom_call.1} parent=52 // pred_check
              _
            $region77: #{tpu_custom_call.1} parent=52 // pred_check_branch
              %357 = sbr.rel (%p341) target = $region79
            $region78: #{tpu_custom_call.1} parent=52 // pred_region
              %s358 = sand.u32 8, 7
            $region79: #{tpu_custom_call.1} parent=52 // pred_fallthru
              _
          $region53: #{tpu_custom_call.1} parent=49 // pred_fallthru
            _
          // Predicated region
          $region54: #{tpu_custom_call.1} parent=49 // pred_check
            %p326 = pneg %p322
          $region55: #{tpu_custom_call.1} parent=49 // pred_check_branch
            %328 = sbr.rel (%p326) target = $region57
          $region56: #{tpu_custom_call.1} parent=49 // pred_region
            %s329 = sshllo.u32 0, 8
            loop: start=0, step=1, limit=1
            $region58: #{tpu_custom_call.1} parent=56 // loop_pre_header
              _
            $region59: #{tpu_custom_call.1} parent=56 // loop_header
              %s331 = sphi 0, %s335
              %p332 = scmp.ge.s32.totalorder %s331, 1
              %s336 = sphi %s276, %s276
              %s337 = sphi %s320, %s320
            $region60: #{tpu_custom_call.1} parent=56 // loop_header_branch
              %334 = sbr.rel (%p332) target = $region64
            $region61: #{tpu_custom_call.1} parent=56 // loop_body
              %v338 = vld [vmem:[%s336] sm:%s329]
              %339 = vst [vmem:[%s337] sm:%s329] %v338
            $region62: #{tpu_custom_call.1} parent=56 // loop_footer
              %s335 = sadd.s32 1, %s331
            $region63: #{tpu_custom_call.1} parent=56 // loop_footer_branch
              %330 = sbr.rel target = $region59
            $region64: #{tpu_custom_call.1} parent=56 // loop_exit
              _
          $region57: #{tpu_custom_call.1} parent=49 // pred_fallthru
            _
          // Predicated region
          $region80: #{tpu_custom_call.1} parent=49 // pred_check
            _
          $region81: #{tpu_custom_call.1} parent=49 // pred_check_branch
            %361 = sbr.rel (0) target = $region83
          $region82: #{tpu_custom_call.1} parent=49 // pred_region
            %362 = vsyncadd [#allocation6], 128
          $region83: #{tpu_custom_call.1} parent=49 // pred_fallthru
            _
          %s363 = smul.u32 4, 1
          %s364 = smul.u32 %s363, 2
          %s365 = sshll.u32 %s364, 4
          %366 = dma.done [#allocation6], %s365
        %v367 = vld [vmem:[#allocation2] sm:$0x77]
        %v368 = vld [vmem:[#allocation2 + $0x8] sm:$0x7]
        %v371 = vcombine.high %v367, %v367
        %372 = vrot.lane.b32.xlu0 %v367, 17
        %v373 = vpop.permute.xlu0 %372
        %374 = vrot.lane.b32.xlu0 %v371, 17
        %v375 = vpop.permute.xlu0 %374
        %376 = vrot.lane.b32.xlu0 %v368, 17
        %v377 = vpop.permute.xlu0 %376
        %vm378 = vcmask 138240
        %v379 = vsel %vm378, %v373, %v375
        %v380 = vsel %vm378, %v375, %v377
        %v383 = vsel %vm310, %v379, 0.0
        %v384 = vsel %vm311, %v380, 0.0
        %v385 = vld [vmem:[%s1] sm:$0xf]
        %s386 = scalar_lea.vmem %s1, 4
        %v387 = vld [vmem:[%s386] sm:$0xf]
        %388 = vrot.lane.b32.xlu0 %v367, 16
        %v389 = vpop.permute.xlu0 %388
        %390 = vrot.lane.b32.xlu0 %v371, 16
        %v391 = vpop.permute.xlu0 %390
        %392 = vrot.lane.b32.xlu0 %v368, 16
        %v393 = vpop.permute.xlu0 %392
        %vm394 = vcmask 130048
        %v395 = vsel %vm394, %v389, %v391
        %v396 = vsel %vm394, %v391, %v393
        %vm397 = vcmask 23552
        %v399 = vsel %vm397, %v387, 0
        %vm401 = vcmask 1042432
        %v402 = vsel %vm401, %v395, 0
        %v404 = vsel %vm401, %v396, 0
        %406 = vmatprep.subr.mxu0 %v404
        %407 = vmatpush1.msra.mxu0 %v402
        %408 = vmatprep.subr.mxu0 0.0
        %409 = vmatpush1.msra.mxu0 0.0
        %410 = vmatprep.subr.mxu0 0.0
        %411 = vmatpush1.msra.mxu0 0.0
        %412 = vmatprep.subr.mxu0 0.0
        %413 = vmatpush1.msra.mxu0 0.0
        %414 = vmatprep.subr.mxu0 0.0
        %415 = vmatpush1.msra.mxu0 0.0
        %416 = vmatprep.subr.mxu0 0.0
        %417 = vmatpush1.msra.mxu0 0.0
        %418 = vmatprep.subr.mxu0 0.0
        %419 = vmatpush1.msra.mxu0 0.0
        %420 = vmatprep.subr.mxu0 0.0
        %421 = vmatpush1.msra.mxu0 0.0
        %422 = vmatprep.subr.mxu0 0.0
        %423 = vmatpush1.msra.mxu0 0.0
        %424 = vmatprep.subr.mxu0 0.0
        %425 = vmatpush1.msra.mxu0 0.0
        %426 = vmatprep.subr.mxu0 0.0
        %427 = vmatpush1.msra.mxu0 0.0
        %428 = vmatprep.subr.mxu0 0.0
        %429 = vmatpush1.msra.mxu0 0.0
        %430 = vmatprep.subr.mxu0 0.0
        %431 = vmatpush1.msra.mxu0 0.0
        %432 = vmatprep.subr.mxu0 0.0
        %433 = vmatpush1.msra.mxu0 0.0
        %434 = vmatprep.subr.mxu0 0.0
        %435 = vmatpush1.msra.mxu0 0.0
        %436 = vmatprep.subr.mxu0 0.0
        %437 = vmatpush1.msra.mxu0 0.0
        %438 = vmatprep.subr.mxu0 0.0
        %439 = vmatpush1.msra.mxu0 0.0
        %440 = vmatprep.subr.mxu0 0.0
        %441 = vmatpush1.msra.mxu0 0.0
        %442 = vmatprep.subr.mxu0 0.0
        %443 = vmatpush1.msra.mxu0 0.0
        %444 = vmatprep.subr.mxu0 0.0
        %445 = vmatpush1.msra.mxu0 0.0
        %446 = vmatprep.subr.mxu0 0.0
        %447 = vmatpush1.msra.mxu0 0.0
        %448 = vmatprep.subr.mxu0 0.0
        %449 = vmatpush1.msra.mxu0 0.0
        %450 = vmatprep.subr.mxu0 0.0
        %451 = vmatpush1.msra.mxu0 0.0
        %452 = vmatprep.subr.mxu0 0.0
        %453 = vmatpush1.msra.mxu0 0.0
        %454 = vmatprep.subr.mxu0 0.0
        %455 = vmatpush1.msra.mxu0 0.0
        %456 = vmatprep.subr.mxu0 0.0
        %457 = vmatpush1.msra.mxu0 0.0
        %458 = vmatprep.subr.mxu0 0.0
        %459 = vmatpush1.msra.mxu0 0.0
        %460 = vmatprep.subr.mxu0 0.0
        %461 = vmatpush1.msra.mxu0 0.0
        %462 = vmatprep.subr.mxu0 0.0
        %463 = vmatpush1.msra.mxu0 0.0
        %464 = vmatprep.subr.mxu0 0.0
        %465 = vmatpush1.msra.mxu0 0.0
        %466 = vmatprep.subr.mxu0 0.0
        %467 = vmatpush1.msra.mxu0 0.0
        %468 = vmatprep.subr.mxu0 0.0
        %469 = vmatpush1.msra.mxu0 0.0
        %470 = vmatprep.mubr.f32.mxu0 0.0
        %471 = vmatmul.mubr.f32.gmra.mrb[0].mxu0 %v399
        %v472 = vpop.f32.mrb[0].mxu0
        %v473 = vadd.f32 0.0, %v472
        %v474 = vpop.f32.mrb[0].mxu0
        %v475 = vadd.f32 0.0, %v474
        %476 = vdwg.mxu0
        %v478 = vsel %vm397, %v385, 0
        %v481 = vsel %vm401, %v383, 0
        %v484 = vsel %vm401, %v384, 0
        %486 = vmatprep.subr.mxu0 %v484
        %487 = vmatpush1.msra.mxu0 %v481
        %488 = vmatprep.subr.mxu0 0.0
        %489 = vmatpush1.msra.mxu0 0.0
        %490 = vmatprep.subr.mxu0 0.0
        %491 = vmatpush1.msra.mxu0 0.0
        %492 = vmatprep.subr.mxu0 0.0
        %493 = vmatpush1.msra.mxu0 0.0
        %494 = vmatprep.subr.mxu0 0.0
        %495 = vmatpush1.msra.mxu0 0.0
        %496 = vmatprep.subr.mxu0 0.0
        %497 = vmatpush1.msra.mxu0 0.0
        %498 = vmatprep.subr.mxu0 0.0
        %499 = vmatpush1.msra.mxu0 0.0
        %500 = vmatprep.subr.mxu0 0.0
        %501 = vmatpush1.msra.mxu0 0.0
        %502 = vmatprep.subr.mxu0 0.0
        %503 = vmatpush1.msra.mxu0 0.0
        %504 = vmatprep.subr.mxu0 0.0
        %505 = vmatpush1.msra.mxu0 0.0
        %506 = vmatprep.subr.mxu0 0.0
        %507 = vmatpush1.msra.mxu0 0.0
        %508 = vmatprep.subr.mxu0 0.0
        %509 = vmatpush1.msra.mxu0 0.0
        %510 = vmatprep.subr.mxu0 0.0
        %511 = vmatpush1.msra.mxu0 0.0
        %512 = vmatprep.subr.mxu0 0.0
        %513 = vmatpush1.msra.mxu0 0.0
        %514 = vmatprep.subr.mxu0 0.0
        %515 = vmatpush1.msra.mxu0 0.0
        %516 = vmatprep.subr.mxu0 0.0
        %517 = vmatpush1.msra.mxu0 0.0
        %518 = vmatprep.subr.mxu0 0.0
        %519 = vmatpush1.msra.mxu0 0.0
        %520 = vmatprep.subr.mxu0 0.0
        %521 = vmatpush1.msra.mxu0 0.0
        %522 = vmatprep.subr.mxu0 0.0
        %523 = vmatpush1.msra.mxu0 0.0
        %524 = vmatprep.subr.mxu0 0.0
        %525 = vmatpush1.msra.mxu0 0.0
        %526 = vmatprep.subr.mxu0 0.0
        %527 = vmatpush1.msra.mxu0 0.0
        %528 = vmatprep.subr.mxu0 0.0
        %529 = vmatpush1.msra.mxu0 0.0
        %530 = vmatprep.subr.mxu0 0.0
        %531 = vmatpush1.msra.mxu0 0.0
        %532 = vmatprep.subr.mxu0 0.0
        %533 = vmatpush1.msra.mxu0 0.0
        %534 = vmatprep.subr.mxu0 0.0
        %535 = vmatpush1.msra.mxu0 0.0
        %536 = vmatprep.subr.mxu0 0.0
        %537 = vmatpush1.msra.mxu0 0.0
        %538 = vmatprep.subr.mxu0 0.0
        %539 = vmatpush1.msra.mxu0 0.0
        %540 = vmatprep.subr.mxu0 0.0
        %541 = vmatpush1.msra.mxu0 0.0
        %542 = vmatprep.subr.mxu0 0.0
        %543 = vmatpush1.msra.mxu0 0.0
        %544 = vmatprep.subr.mxu0 0.0
        %545 = vmatpush1.msra.mxu0 0.0
        %546 = vmatprep.subr.mxu0 0.0
        %547 = vmatpush1.msra.mxu0 0.0
        %548 = vmatprep.subr.mxu0 0.0
        %549 = vmatpush1.msra.mxu0 0.0
        %550 = vmatprep.mubr.f32.mxu0 0.0
        %551 = vmatmul.mubr.f32.gmra.mrb[0].mxu0 %v478
        %v552 = vpop.f32.mrb[0].mxu0
        %v553 = vadd.f32 %v473, %v552
        %v554 = vpop.f32.mrb[0].mxu0
        %v555 = vadd.f32 %v475, %v554
        %556 = vdwg.mxu0
        %v557 = vld [vmem:[#allocation2] sm:$0x77]
        %v558 = vld [vmem:[#allocation2 + $0x8] sm:$0x7]
        %v561 = vcombine.high %v557, %v557
        %562 = vrot.lane.b32.xlu0 %v557, 15
        %v563 = vpop.permute.xlu0 %562
        %564 = vrot.lane.b32.xlu0 %v561, 15
        %v565 = vpop.permute.xlu0 %564
        %566 = vrot.lane.b32.xlu0 %v558, 15
        %v567 = vpop.permute.xlu0 %566
        %vm568 = vcmask 121856
        %v569 = vsel %vm568, %v563, %v565
        %v570 = vsel %vm568, %v565, %v567
        %v573 = vsel %vm314, %v569, 0.0
        %v574 = vsel %vm315, %v570, 0.0
        %s575 = scalar_lea.vmem %s1, 8
        %v576 = vld [vmem:[%s575] sm:$0xf]
        %v578 = vsel %vm397, %v576, 0
        %v581 = vsel %vm401, %v573, 0
        %v584 = vsel %vm401, %v574, 0
        %586 = vmatprep.subr.mxu0 %v584
        %587 = vmatpush1.msra.mxu0 %v581
        %588 = vmatprep.subr.mxu0 0.0
        %589 = vmatpush1.msra.mxu0 0.0
        %590 = vmatprep.subr.mxu0 0.0
        %591 = vmatpush1.msra.mxu0 0.0
        %592 = vmatprep.subr.mxu0 0.0
        %593 = vmatpush1.msra.mxu0 0.0
        %594 = vmatprep.subr.mxu0 0.0
        %595 = vmatpush1.msra.mxu0 0.0
        %596 = vmatprep.subr.mxu0 0.0
        %597 = vmatpush1.msra.mxu0 0.0
        %598 = vmatprep.subr.mxu0 0.0
        %599 = vmatpush1.msra.mxu0 0.0
        %600 = vmatprep.subr.mxu0 0.0
        %601 = vmatpush1.msra.mxu0 0.0
        %602 = vmatprep.subr.mxu0 0.0
        %603 = vmatpush1.msra.mxu0 0.0
        %604 = vmatprep.subr.mxu0 0.0
        %605 = vmatpush1.msra.mxu0 0.0
        %606 = vmatprep.subr.mxu0 0.0
        %607 = vmatpush1.msra.mxu0 0.0
        %608 = vmatprep.subr.mxu0 0.0
        %609 = vmatpush1.msra.mxu0 0.0
        %610 = vmatprep.subr.mxu0 0.0
        %611 = vmatpush1.msra.mxu0 0.0
        %612 = vmatprep.subr.mxu0 0.0
        %613 = vmatpush1.msra.mxu0 0.0
        %614 = vmatprep.subr.mxu0 0.0
        %615 = vmatpush1.msra.mxu0 0.0
        %616 = vmatprep.subr.mxu0 0.0
        %617 = vmatpush1.msra.mxu0 0.0
        %618 = vmatprep.subr.mxu0 0.0
        %619 = vmatpush1.msra.mxu0 0.0
        %620 = vmatprep.subr.mxu0 0.0
        %621 = vmatpush1.msra.mxu0 0.0
        %622 = vmatprep.subr.mxu0 0.0
        %623 = vmatpush1.msra.mxu0 0.0
        %624 = vmatprep.subr.mxu0 0.0
        %625 = vmatpush1.msra.mxu0 0.0
        %626 = vmatprep.subr.mxu0 0.0
        %627 = vmatpush1.msra.mxu0 0.0
        %628 = vmatprep.subr.mxu0 0.0
        %629 = vmatpush1.msra.mxu0 0.0
        %630 = vmatprep.subr.mxu0 0.0
        %631 = vmatpush1.msra.mxu0 0.0
        %632 = vmatprep.subr.mxu0 0.0
        %633 = vmatpush1.msra.mxu0 0.0
        %634 = vmatprep.subr.mxu0 0.0
        %635 = vmatpush1.msra.mxu0 0.0
        %636 = vmatprep.subr.mxu0 0.0
        %637 = vmatpush1.msra.mxu0 0.0
        %638 = vmatprep.subr.mxu0 0.0
        %639 = vmatpush1.msra.mxu0 0.0
        %640 = vmatprep.subr.mxu0 0.0
        %641 = vmatpush1.msra.mxu0 0.0
        %642 = vmatprep.subr.mxu0 0.0
        %643 = vmatpush1.msra.mxu0 0.0
        %644 = vmatprep.subr.mxu0 0.0
        %645 = vmatpush1.msra.mxu0 0.0
        %646 = vmatprep.subr.mxu0 0.0
        %647 = vmatpush1.msra.mxu0 0.0
        %648 = vmatprep.subr.mxu0 0.0
        %649 = vmatpush1.msra.mxu0 0.0
        %650 = vmatprep.mubr.f32.mxu0 0.0
        %651 = vmatmul.mubr.f32.gmra.mrb[0].mxu0 %v578
        %v652 = vpop.f32.mrb[0].mxu0
        %v653 = vadd.f32 0.0, %v652
        %v654 = vpop.f32.mrb[0].mxu0
        %v655 = vadd.f32 0.0, %v654
        %656 = vdwg.mxu0
        %v657 = vadd.f32 %v553, %v653
        %v658 = vadd.f32 %v555, %v655
        %v659 = vld [vmem:[#allocation2] sm:$0x77]
        %v660 = vld [vmem:[#allocation2 + $0x8] sm:$0x7]
        %v663 = vcombine.high %v659, %v659
        %664 = vrot.lane.b32.xlu0 %v659, 1
        %v665 = vpop.permute.xlu0 %664
        %666 = vrot.lane.b32.xlu0 %v663, 1
        %v667 = vpop.permute.xlu0 %666
        %668 = vrot.lane.b32.xlu0 %v660, 1
        %v669 = vpop.permute.xlu0 %668
        %vm670 = vcmask 7168
        %v671 = vsel %vm670, %v665, %v667
        %v672 = vsel %vm670, %v667, %v669
        %v675 = vsel %vm310, %v671, 0.0
        %v676 = vsel %vm311, %v672, 0.0
        %s677 = scalar_lea.vmem %s1, 12
        %v678 = vld [vmem:[%s677] sm:$0xf]
        %v680 = vsel %vm397, %v678, 0
        %v683 = vsel %vm401, %v675, 0
        %v686 = vsel %vm401, %v676, 0
        %688 = vmatprep.subr.mxu0 %v686
        %689 = vmatpush1.msra.mxu0 %v683
        %690 = vmatprep.subr.mxu0 0.0
        %691 = vmatpush1.msra.mxu0 0.0
        %692 = vmatprep.subr.mxu0 0.0
        %693 = vmatpush1.msra.mxu0 0.0
        %694 = vmatprep.subr.mxu0 0.0
        %695 = vmatpush1.msra.mxu0 0.0
        %696 = vmatprep.subr.mxu0 0.0
        %697 = vmatpush1.msra.mxu0 0.0
        %698 = vmatprep.subr.mxu0 0.0
        %699 = vmatpush1.msra.mxu0 0.0
        %700 = vmatprep.subr.mxu0 0.0
        %701 = vmatpush1.msra.mxu0 0.0
        %702 = vmatprep.subr.mxu0 0.0
        %703 = vmatpush1.msra.mxu0 0.0
        %704 = vmatprep.subr.mxu0 0.0
        %705 = vmatpush1.msra.mxu0 0.0
        %706 = vmatprep.subr.mxu0 0.0
        %707 = vmatpush1.msra.mxu0 0.0
        %708 = vmatprep.subr.mxu0 0.0
        %709 = vmatpush1.msra.mxu0 0.0
        %710 = vmatprep.subr.mxu0 0.0
        %711 = vmatpush1.msra.mxu0 0.0
        %712 = vmatprep.subr.mxu0 0.0
        %713 = vmatpush1.msra.mxu0 0.0
        %714 = vmatprep.subr.mxu0 0.0
        %715 = vmatpush1.msra.mxu0 0.0
        %716 = vmatprep.subr.mxu0 0.0
        %717 = vmatpush1.msra.mxu0 0.0
        %718 = vmatprep.subr.mxu0 0.0
        %719 = vmatpush1.msra.mxu0 0.0
        %720 = vmatprep.subr.mxu0 0.0
        %721 = vmatpush1.msra.mxu0 0.0
        %722 = vmatprep.subr.mxu0 0.0
        %723 = vmatpush1.msra.mxu0 0.0
        %724 = vmatprep.subr.mxu0 0.0
        %725 = vmatpush1.msra.mxu0 0.0
        %726 = vmatprep.subr.mxu0 0.0
        %727 = vmatpush1.msra.mxu0 0.0
        %728 = vmatprep.subr.mxu0 0.0
        %729 = vmatpush1.msra.mxu0 0.0
        %730 = vmatprep.subr.mxu0 0.0
        %731 = vmatpush1.msra.mxu0 0.0
        %732 = vmatprep.subr.mxu0 0.0
        %733 = vmatpush1.msra.mxu0 0.0
        %734 = vmatprep.subr.mxu0 0.0
        %735 = vmatpush1.msra.mxu0 0.0
        %736 = vmatprep.subr.mxu0 0.0
        %737 = vmatpush1.msra.mxu0 0.0
        %738 = vmatprep.subr.mxu0 0.0
        %739 = vmatpush1.msra.mxu0 0.0
        %740 = vmatprep.subr.mxu0 0.0
        %741 = vmatpush1.msra.mxu0 0.0
        %742 = vmatprep.subr.mxu0 0.0
        %743 = vmatpush1.msra.mxu0 0.0
        %744 = vmatprep.subr.mxu0 0.0
        %745 = vmatpush1.msra.mxu0 0.0
        %746 = vmatprep.subr.mxu0 0.0
        %747 = vmatpush1.msra.mxu0 0.0
        %748 = vmatprep.subr.mxu0 0.0
        %749 = vmatpush1.msra.mxu0 0.0
        %750 = vmatprep.subr.mxu0 0.0
        %751 = vmatpush1.msra.mxu0 0.0
        %752 = vmatprep.mubr.f32.mxu0 0.0
        %753 = vmatmul.mubr.f32.gmra.mrb[0].mxu0 %v680
        %v754 = vpop.f32.mrb[0].mxu0
        %v755 = vadd.f32 0.0, %v754
        %v756 = vpop.f32.mrb[0].mxu0
        %v757 = vadd.f32 0.0, %v756
        %758 = vdwg.mxu0
        %v759 = vadd.f32 %v657, %v755
        %v760 = vadd.f32 %v658, %v757
        %v761 = vld [vmem:[#allocation2 + $0x4] sm:$0x77]
        %s762 = scalar_lea.vmem %s1, 16
        %v763 = vld [vmem:[%s762] sm:$0xf]
        %v765 = vcombine.high %v761, %v761
        %v767 = vsel %vm397, %v763, 0
        %v769 = vsel %vm401, %v761, 0
        %v771 = vsel %vm401, %v765, 0
        %773 = vmatprep.subr.mxu0 %v771
        %774 = vmatpush1.msra.mxu0 %v769
        %775 = vmatprep.subr.mxu0 0.0
        %776 = vmatpush1.msra.mxu0 0.0
        %777 = vmatprep.subr.mxu0 0.0
        %778 = vmatpush1.msra.mxu0 0.0
        %779 = vmatprep.subr.mxu0 0.0
        %780 = vmatpush1.msra.mxu0 0.0
        %781 = vmatprep.subr.mxu0 0.0
        %782 = vmatpush1.msra.mxu0 0.0
        %783 = vmatprep.subr.mxu0 0.0
        %784 = vmatpush1.msra.mxu0 0.0
        %785 = vmatprep.subr.mxu0 0.0
        %786 = vmatpush1.msra.mxu0 0.0
        %787 = vmatprep.subr.mxu0 0.0
        %788 = vmatpush1.msra.mxu0 0.0
        %789 = vmatprep.subr.mxu0 0.0
        %790 = vmatpush1.msra.mxu0 0.0
        %791 = vmatprep.subr.mxu0 0.0
        %792 = vmatpush1.msra.mxu0 0.0
        %793 = vmatprep.subr.mxu0 0.0
        %794 = vmatpush1.msra.mxu0 0.0
        %795 = vmatprep.subr.mxu0 0.0
        %796 = vmatpush1.msra.mxu0 0.0
        %797 = vmatprep.subr.mxu0 0.0
        %798 = vmatpush1.msra.mxu0 0.0
        %799 = vmatprep.subr.mxu0 0.0
        %800 = vmatpush1.msra.mxu0 0.0
        %801 = vmatprep.subr.mxu0 0.0
        %802 = vmatpush1.msra.mxu0 0.0
        %803 = vmatprep.subr.mxu0 0.0
        %804 = vmatpush1.msra.mxu0 0.0
        %805 = vmatprep.subr.mxu0 0.0
        %806 = vmatpush1.msra.mxu0 0.0
        %807 = vmatprep.subr.mxu0 0.0
        %808 = vmatpush1.msra.mxu0 0.0
        %809 = vmatprep.subr.mxu0 0.0
        %810 = vmatpush1.msra.mxu0 0.0
        %811 = vmatprep.subr.mxu0 0.0
        %812 = vmatpush1.msra.mxu0 0.0
        %813 = vmatprep.subr.mxu0 0.0
        %814 = vmatpush1.msra.mxu0 0.0
        %815 = vmatprep.subr.mxu0 0.0
        %816 = vmatpush1.msra.mxu0 0.0
        %817 = vmatprep.subr.mxu0 0.0
        %818 = vmatpush1.msra.mxu0 0.0
        %819 = vmatprep.subr.mxu0 0.0
        %820 = vmatpush1.msra.mxu0 0.0
        %821 = vmatprep.subr.mxu0 0.0
        %822 = vmatpush1.msra.mxu0 0.0
        %823 = vmatprep.subr.mxu0 0.0
        %824 = vmatpush1.msra.mxu0 0.0
        %825 = vmatprep.subr.mxu0 0.0
        %826 = vmatpush1.msra.mxu0 0.0
        %827 = vmatprep.subr.mxu0 0.0
        %828 = vmatpush1.msra.mxu0 0.0
        %829 = vmatprep.subr.mxu0 0.0
        %830 = vmatpush1.msra.mxu0 0.0
        %831 = vmatprep.subr.mxu0 0.0
        %832 = vmatpush1.msra.mxu0 0.0
        %833 = vmatprep.subr.mxu0 0.0
        %834 = vmatpush1.msra.mxu0 0.0
        %835 = vmatprep.subr.mxu0 0.0
        %836 = vmatpush1.msra.mxu0 0.0
        %837 = vmatprep.mubr.f32.mxu0 0.0
        %838 = vmatmul.mubr.f32.gmra.mrb[0].mxu0 %v767
        %v839 = vpop.f32.mrb[0].mxu0
        %v840 = vadd.f32 0.0, %v839
        %v841 = vpop.f32.mrb[0].mxu0
        %v842 = vadd.f32 0.0, %v841
        %843 = vdwg.mxu0
        %v844 = vadd.f32 %v759, %v840
        %v845 = vadd.f32 %v760, %v842
        %v846 = vld [vmem:[#allocation2 + $0x4] sm:$0x77]
        %v847 = vld [vmem:[#allocation2 + $0xc] sm:$0x7]
        %v850 = vcombine.high %v846, %v846
        %851 = vrot.lane.b32.xlu0 %v846, 127
        %v852 = vpop.permute.xlu0 %851
        %853 = vrot.lane.b32.xlu0 %v850, 127
        %v854 = vpop.permute.xlu0 %853
        %855 = vrot.lane.b32.xlu0 %v847, 127
        %v856 = vpop.permute.xlu0 %855
        %vm857 = vcmask 1039360
        %v858 = vsel %vm857, %v852, %v854
        %v859 = vsel %vm857, %v854, %v856
        %v862 = vsel %vm314, %v858, 0.0
        %v863 = vsel %vm315, %v859, 0.0
        %s864 = scalar_lea.vmem %s1, 20
        %v865 = vld [vmem:[%s864] sm:$0xf]
        %v867 = vsel %vm397, %v865, 0
        %v870 = vsel %vm401, %v862, 0
        %v873 = vsel %vm401, %v863, 0
        %875 = vmatprep.subr.mxu0 %v873
        %876 = vmatpush1.msra.mxu0 %v870
        %877 = vmatprep.subr.mxu0 0.0
        %878 = vmatpush1.msra.mxu0 0.0
        %879 = vmatprep.subr.mxu0 0.0
        %880 = vmatpush1.msra.mxu0 0.0
        %881 = vmatprep.subr.mxu0 0.0
        %882 = vmatpush1.msra.mxu0 0.0
        %883 = vmatprep.subr.mxu0 0.0
        %884 = vmatpush1.msra.mxu0 0.0
        %885 = vmatprep.subr.mxu0 0.0
        %886 = vmatpush1.msra.mxu0 0.0
        %887 = vmatprep.subr.mxu0 0.0
        %888 = vmatpush1.msra.mxu0 0.0
        %889 = vmatprep.subr.mxu0 0.0
        %890 = vmatpush1.msra.mxu0 0.0
        %891 = vmatprep.subr.mxu0 0.0
        %892 = vmatpush1.msra.mxu0 0.0
        %893 = vmatprep.subr.mxu0 0.0
        %894 = vmatpush1.msra.mxu0 0.0
        %895 = vmatprep.subr.mxu0 0.0
        %896 = vmatpush1.msra.mxu0 0.0
        %897 = vmatprep.subr.mxu0 0.0
        %898 = vmatpush1.msra.mxu0 0.0
        %899 = vmatprep.subr.mxu0 0.0
        %900 = vmatpush1.msra.mxu0 0.0
        %901 = vmatprep.subr.mxu0 0.0
        %902 = vmatpush1.msra.mxu0 0.0
        %903 = vmatprep.subr.mxu0 0.0
        %904 = vmatpush1.msra.mxu0 0.0
        %905 = vmatprep.subr.mxu0 0.0
        %906 = vmatpush1.msra.mxu0 0.0
        %907 = vmatprep.subr.mxu0 0.0
        %908 = vmatpush1.msra.mxu0 0.0
        %909 = vmatprep.subr.mxu0 0.0
        %910 = vmatpush1.msra.mxu0 0.0
        %911 = vmatprep.subr.mxu0 0.0
        %912 = vmatpush1.msra.mxu0 0.0
        %913 = vmatprep.subr.mxu0 0.0
        %914 = vmatpush1.msra.mxu0 0.0
        %915 = vmatprep.subr.mxu0 0.0
        %916 = vmatpush1.msra.mxu0 0.0
        %917 = vmatprep.subr.mxu0 0.0
        %918 = vmatpush1.msra.mxu0 0.0
        %919 = vmatprep.subr.mxu0 0.0
        %920 = vmatpush1.msra.mxu0 0.0
        %921 = vmatprep.subr.mxu0 0.0
        %922 = vmatpush1.msra.mxu0 0.0
        %923 = vmatprep.subr.mxu0 0.0
        %924 = vmatpush1.msra.mxu0 0.0
        %925 = vmatprep.subr.mxu0 0.0
        %926 = vmatpush1.msra.mxu0 0.0
        %927 = vmatprep.subr.mxu0 0.0
        %928 = vmatpush1.msra.mxu0 0.0
        %929 = vmatprep.subr.mxu0 0.0
        %930 = vmatpush1.msra.mxu0 0.0
        %931 = vmatprep.subr.mxu0 0.0
        %932 = vmatpush1.msra.mxu0 0.0
        %933 = vmatprep.subr.mxu0 0.0
        %934 = vmatpush1.msra.mxu0 0.0
        %935 = vmatprep.subr.mxu0 0.0
        %936 = vmatpush1.msra.mxu0 0.0
        %937 = vmatprep.subr.mxu0 0.0
        %938 = vmatpush1.msra.mxu0 0.0
        %939 = vmatprep.mubr.f32.mxu0 0.0
        %940 = vmatmul.mubr.f32.gmra.mrb[0].mxu0 %v867
        %v941 = vpop.f32.mrb[0].mxu0
        %v942 = vadd.f32 0.0, %v941
        %v943 = vpop.f32.mrb[0].mxu0
        %v944 = vadd.f32 0.0, %v943
        %945 = vdwg.mxu0
        %v946 = vadd.f32 %v844, %v942
        %v947 = vadd.f32 %v845, %v944
        %v948 = vld [vmem:[#allocation2 + $0x4] sm:$0x77]
        %v949 = vld [vmem:[#allocation2 + $0xc] sm:$0x7]
        %v952 = vcombine.high %v948, %v948
        %953 = vrot.lane.b32.xlu0 %v948, 113
        %v954 = vpop.permute.xlu0 %953
        %955 = vrot.lane.b32.xlu0 %v952, 113
        %v956 = vpop.permute.xlu0 %955
        %957 = vrot.lane.b32.xlu0 %v949, 113
        %v958 = vpop.permute.xlu0 %957
        %vm959 = vcmask 924672
        %v960 = vsel %vm959, %v954, %v956
        %v961 = vsel %vm959, %v956, %v958
        %v964 = vsel %vm310, %v960, 0.0
        %v965 = vsel %vm311, %v961, 0.0
        %s966 = scalar_lea.vmem %s1, 24
        %v967 = vld [vmem:[%s966] sm:$0xf]
        %v969 = vsel %vm397, %v967, 0
        %v972 = vsel %vm401, %v964, 0
        %v975 = vsel %vm401, %v965, 0
        %977 = vmatprep.subr.mxu0 %v975
        %978 = vmatpush1.msra.mxu0 %v972
        %979 = vmatprep.subr.mxu0 0.0
        %980 = vmatpush1.msra.mxu0 0.0
        %981 = vmatprep.subr.mxu0 0.0
        %982 = vmatpush1.msra.mxu0 0.0
        %983 = vmatprep.subr.mxu0 0.0
        %984 = vmatpush1.msra.mxu0 0.0
        %985 = vmatprep.subr.mxu0 0.0
        %986 = vmatpush1.msra.mxu0 0.0
        %987 = vmatprep.subr.mxu0 0.0
        %988 = vmatpush1.msra.mxu0 0.0
        %989 = vmatprep.subr.mxu0 0.0
        %990 = vmatpush1.msra.mxu0 0.0
        %991 = vmatprep.subr.mxu0 0.0
        %992 = vmatpush1.msra.mxu0 0.0
        %993 = vmatprep.subr.mxu0 0.0
        %994 = vmatpush1.msra.mxu0 0.0
        %995 = vmatprep.subr.mxu0 0.0
        %996 = vmatpush1.msra.mxu0 0.0
        %997 = vmatprep.subr.mxu0 0.0
        %998 = vmatpush1.msra.mxu0 0.0
        %999 = vmatprep.subr.mxu0 0.0
        %1000 = vmatpush1.msra.mxu0 0.0
        %1001 = vmatprep.subr.mxu0 0.0
        %1002 = vmatpush1.msra.mxu0 0.0
        %1003 = vmatprep.subr.mxu0 0.0
        %1004 = vmatpush1.msra.mxu0 0.0
        %1005 = vmatprep.subr.mxu0 0.0
        %1006 = vmatpush1.msra.mxu0 0.0
        %1007 = vmatprep.subr.mxu0 0.0
        %1008 = vmatpush1.msra.mxu0 0.0
        %1009 = vmatprep.subr.mxu0 0.0
        %1010 = vmatpush1.msra.mxu0 0.0
        %1011 = vmatprep.subr.mxu0 0.0
        %1012 = vmatpush1.msra.mxu0 0.0
        %1013 = vmatprep.subr.mxu0 0.0
        %1014 = vmatpush1.msra.mxu0 0.0
        %1015 = vmatprep.subr.mxu0 0.0
        %1016 = vmatpush1.msra.mxu0 0.0
        %1017 = vmatprep.subr.mxu0 0.0
        %1018 = vmatpush1.msra.mxu0 0.0
        %1019 = vmatprep.subr.mxu0 0.0
        %1020 = vmatpush1.msra.mxu0 0.0
        %1021 = vmatprep.subr.mxu0 0.0
        %1022 = vmatpush1.msra.mxu0 0.0
        %1023 = vmatprep.subr.mxu0 0.0
        %1024 = vmatpush1.msra.mxu0 0.0
        %1025 = vmatprep.subr.mxu0 0.0
        %1026 = vmatpush1.msra.mxu0 0.0
        %1027 = vmatprep.subr.mxu0 0.0
        %1028 = vmatpush1.msra.mxu0 0.0
        %1029 = vmatprep.subr.mxu0 0.0
        %1030 = vmatpush1.msra.mxu0 0.0
        %1031 = vmatprep.subr.mxu0 0.0
        %1032 = vmatpush1.msra.mxu0 0.0
        %1033 = vmatprep.subr.mxu0 0.0
        %1034 = vmatpush1.msra.mxu0 0.0
        %1035 = vmatprep.subr.mxu0 0.0
        %1036 = vmatpush1.msra.mxu0 0.0
        %1037 = vmatprep.subr.mxu0 0.0
        %1038 = vmatpush1.msra.mxu0 0.0
        %1039 = vmatprep.subr.mxu0 0.0
        %1040 = vmatpush1.msra.mxu0 0.0
        %1041 = vmatprep.mubr.f32.mxu0 0.0
        %1042 = vmatmul.mubr.f32.gmra.mrb[0].mxu0 %v969
        %v1043 = vpop.f32.mrb[0].mxu0
        %v1044 = vadd.f32 0.0, %v1043
        %v1045 = vpop.f32.mrb[0].mxu0
        %v1046 = vadd.f32 0.0, %v1045
        %1047 = vdwg.mxu0
        %v1048 = vadd.f32 %v946, %v1044
        %v1049 = vadd.f32 %v947, %v1046
        %v1050 = vld [vmem:[#allocation2 + $0x4] sm:$0x77]
        %v1051 = vld [vmem:[#allocation2 + $0xc] sm:$0x7]
        %s1052 = scalar_lea.vmem %s1, 28
        %v1053 = vld [vmem:[%s1052] sm:$0xf]
        %v1056 = vcombine.high %v1050, %v1050
        %1057 = vrot.lane.b32.xlu0 %v1050, 112
        %v1058 = vpop.permute.xlu0 %1057
        %1059 = vrot.lane.b32.xlu0 %v1056, 112
        %v1060 = vpop.permute.xlu0 %1059
        %1061 = vrot.lane.b32.xlu0 %v1051, 112
        %v1062 = vpop.permute.xlu0 %1061
        %vm1063 = vcmask 916480
        %v1064 = vsel %vm1063, %v1058, %v1060
        %v1065 = vsel %vm1063, %v1060, %v1062
        %v1067 = vsel %vm397, %v1053, 0
        %v1069 = vsel %vm401, %v1064, 0
        %v1071 = vsel %vm401, %v1065, 0
        %1073 = vmatprep.subr.mxu0 %v1071
        %1074 = vmatpush1.msra.mxu0 %v1069
        %1075 = vmatprep.subr.mxu0 0.0
        %1076 = vmatpush1.msra.mxu0 0.0
        %1077 = vmatprep.subr.mxu0 0.0
        %1078 = vmatpush1.msra.mxu0 0.0
        %1079 = vmatprep.subr.mxu0 0.0
        %1080 = vmatpush1.msra.mxu0 0.0
        %1081 = vmatprep.subr.mxu0 0.0
        %1082 = vmatpush1.msra.mxu0 0.0
        %1083 = vmatprep.subr.mxu0 0.0
        %1084 = vmatpush1.msra.mxu0 0.0
        %1085 = vmatprep.subr.mxu0 0.0
        %1086 = vmatpush1.msra.mxu0 0.0
        %1087 = vmatprep.subr.mxu0 0.0
        %1088 = vmatpush1.msra.mxu0 0.0
        %1089 = vmatprep.subr.mxu0 0.0
        %1090 = vmatpush1.msra.mxu0 0.0
        %1091 = vmatprep.subr.mxu0 0.0
        %1092 = vmatpush1.msra.mxu0 0.0
        %1093 = vmatprep.subr.mxu0 0.0
        %1094 = vmatpush1.msra.mxu0 0.0
        %1095 = vmatprep.subr.mxu0 0.0
        %1096 = vmatpush1.msra.mxu0 0.0
        %1097 = vmatprep.subr.mxu0 0.0
        %1098 = vmatpush1.msra.mxu0 0.0
        %1099 = vmatprep.subr.mxu0 0.0
        %1100 = vmatpush1.msra.mxu0 0.0
        %1101 = vmatprep.subr.mxu0 0.0
        %1102 = vmatpush1.msra.mxu0 0.0
        %1103 = vmatprep.subr.mxu0 0.0
        %1104 = vmatpush1.msra.mxu0 0.0
        %1105 = vmatprep.subr.mxu0 0.0
        %1106 = vmatpush1.msra.mxu0 0.0
        %1107 = vmatprep.subr.mxu0 0.0
        %1108 = vmatpush1.msra.mxu0 0.0
        %1109 = vmatprep.subr.mxu0 0.0
        %1110 = vmatpush1.msra.mxu0 0.0
        %1111 = vmatprep.subr.mxu0 0.0
        %1112 = vmatpush1.msra.mxu0 0.0
        %1113 = vmatprep.subr.mxu0 0.0
        %1114 = vmatpush1.msra.mxu0 0.0
        %1115 = vmatprep.subr.mxu0 0.0
        %1116 = vmatpush1.msra.mxu0 0.0
        %1117 = vmatprep.subr.mxu0 0.0
        %1118 = vmatpush1.msra.mxu0 0.0
        %1119 = vmatprep.subr.mxu0 0.0
        %1120 = vmatpush1.msra.mxu0 0.0
        %1121 = vmatprep.subr.mxu0 0.0
        %1122 = vmatpush1.msra.mxu0 0.0
        %1123 = vmatprep.subr.mxu0 0.0
        %1124 = vmatpush1.msra.mxu0 0.0
        %1125 = vmatprep.subr.mxu0 0.0
        %1126 = vmatpush1.msra.mxu0 0.0
        %1127 = vmatprep.subr.mxu0 0.0
        %1128 = vmatpush1.msra.mxu0 0.0
        %1129 = vmatprep.subr.mxu0 0.0
        %1130 = vmatpush1.msra.mxu0 0.0
        %1131 = vmatprep.subr.mxu0 0.0
        %1132 = vmatpush1.msra.mxu0 0.0
        %1133 = vmatprep.subr.mxu0 0.0
        %1134 = vmatpush1.msra.mxu0 0.0
        %1135 = vmatprep.subr.mxu0 0.0
        %1136 = vmatpush1.msra.mxu0 0.0
        %1137 = vmatprep.mubr.f32.mxu0 0.0
        %1138 = vmatmul.mubr.f32.gmra.mrb[0].mxu0 %v1067
        %v1139 = vpop.f32.mrb[0].mxu0
        %v1140 = vadd.f32 0.0, %v1139
        %v1141 = vpop.f32.mrb[0].mxu0
        %v1142 = vadd.f32 0.0, %v1141
        %1143 = vdwg.mxu0
        %v1144 = vadd.f32 %v1048, %v1140
        %v1145 = vadd.f32 %v1049, %v1142
        %v1146 = vld [vmem:[#allocation2 + $0x4] sm:$0x77]
        %v1147 = vld [vmem:[#allocation2 + $0xc] sm:$0x7]
        %v1150 = vcombine.high %v1146, %v1146
        %1151 = vrot.lane.b32.xlu0 %v1146, 111
        %v1152 = vpop.permute.xlu0 %1151
        %1153 = vrot.lane.b32.xlu0 %v1150, 111
        %v1154 = vpop.permute.xlu0 %1153
        %1155 = vrot.lane.b32.xlu0 %v1147, 111
        %v1156 = vpop.permute.xlu0 %1155
        %vm1157 = vcmask 908288
        %v1158 = vsel %vm1157, %v1152, %v1154
        %v1159 = vsel %vm1157, %v1154, %v1156
        %v1162 = vsel %vm314, %v1158, 0.0
        %v1163 = vsel %vm315, %v1159, 0.0
        %s1164 = scalar_lea.vmem %s1, 32
        %v1165 = vld [vmem:[%s1164] sm:$0xf]
        %v1167 = vsel %vm397, %v1165, 0
        %v1170 = vsel %vm401, %v1162, 0
        %v1173 = vsel %vm401, %v1163, 0
        %1175 = vmatprep.subr.mxu0 %v1173
        %1176 = vmatpush1.msra.mxu0 %v1170
        %1177 = vmatprep.subr.mxu0 0.0
        %1178 = vmatpush1.msra.mxu0 0.0
        %1179 = vmatprep.subr.mxu0 0.0
        %1180 = vmatpush1.msra.mxu0 0.0
        %1181 = vmatprep.subr.mxu0 0.0
        %1182 = vmatpush1.msra.mxu0 0.0
        %1183 = vmatprep.subr.mxu0 0.0
        %1184 = vmatpush1.msra.mxu0 0.0
        %1185 = vmatprep.subr.mxu0 0.0
        %1186 = vmatpush1.msra.mxu0 0.0
        %1187 = vmatprep.subr.mxu0 0.0
        %1188 = vmatpush1.msra.mxu0 0.0
        %1189 = vmatprep.subr.mxu0 0.0
        %1190 = vmatpush1.msra.mxu0 0.0
        %1191 = vmatprep.subr.mxu0 0.0
        %1192 = vmatpush1.msra.mxu0 0.0
        %1193 = vmatprep.subr.mxu0 0.0
        %1194 = vmatpush1.msra.mxu0 0.0
        %1195 = vmatprep.subr.mxu0 0.0
        %1196 = vmatpush1.msra.mxu0 0.0
        %1197 = vmatprep.subr.mxu0 0.0
        %1198 = vmatpush1.msra.mxu0 0.0
        %1199 = vmatprep.subr.mxu0 0.0
        %1200 = vmatpush1.msra.mxu0 0.0
        %1201 = vmatprep.subr.mxu0 0.0
        %1202 = vmatpush1.msra.mxu0 0.0
        %1203 = vmatprep.subr.mxu0 0.0
        %1204 = vmatpush1.msra.mxu0 0.0
        %1205 = vmatprep.subr.mxu0 0.0
        %1206 = vmatpush1.msra.mxu0 0.0
        %1207 = vmatprep.subr.mxu0 0.0
        %1208 = vmatpush1.msra.mxu0 0.0
        %1209 = vmatprep.subr.mxu0 0.0
        %1210 = vmatpush1.msra.mxu0 0.0
        %1211 = vmatprep.subr.mxu0 0.0
        %1212 = vmatpush1.msra.mxu0 0.0
        %1213 = vmatprep.subr.mxu0 0.0
        %1214 = vmatpush1.msra.mxu0 0.0
        %1215 = vmatprep.subr.mxu0 0.0
        %1216 = vmatpush1.msra.mxu0 0.0
        %1217 = vmatprep.subr.mxu0 0.0
        %1218 = vmatpush1.msra.mxu0 0.0
        %1219 = vmatprep.subr.mxu0 0.0
        %1220 = vmatpush1.msra.mxu0 0.0
        %1221 = vmatprep.subr.mxu0 0.0
        %1222 = vmatpush1.msra.mxu0 0.0
        %1223 = vmatprep.subr.mxu0 0.0
        %1224 = vmatpush1.msra.mxu0 0.0
        %1225 = vmatprep.subr.mxu0 0.0
        %1226 = vmatpush1.msra.mxu0 0.0
        %1227 = vmatprep.subr.mxu0 0.0
        %1228 = vmatpush1.msra.mxu0 0.0
        %1229 = vmatprep.subr.mxu0 0.0
        %1230 = vmatpush1.msra.mxu0 0.0
        %1231 = vmatprep.subr.mxu0 0.0
        %1232 = vmatpush1.msra.mxu0 0.0
        %1233 = vmatprep.subr.mxu0 0.0
        %1234 = vmatpush1.msra.mxu0 0.0
        %1235 = vmatprep.subr.mxu0 0.0
        %1236 = vmatpush1.msra.mxu0 0.0
        %1237 = vmatprep.subr.mxu0 0.0
        %1238 = vmatpush1.msra.mxu0 0.0
        %1239 = vmatprep.mubr.f32.mxu0 0.0
        %1240 = vmatmul.mubr.f32.gmra.mrb[0].mxu0 %v1167
        %v1241 = vpop.f32.mrb[0].mxu0
        %v1242 = vadd.f32 0.0, %v1241
        %v1243 = vpop.f32.mrb[0].mxu0
        %v1244 = vadd.f32 0.0, %v1243
        %1245 = vdwg.mxu0
        %v1246 = vadd.f32 %v1144, %v1242
        %v1247 = vadd.f32 %v1145, %v1244
        %v1248 = vld [vmem:[%s2] sm:$0xf]
        %1250 = vset.pattern.permute.xlu0 0
        %1251 = vperm.xlu0 %1250, %v1248
        %v1252 = vpop.permute.xlu0 %1251
        %v1254 = vadd.f32 %v1246, %v1252
        %v1255 = vadd.f32 %v1247, %v1252
        %v1258 = vcombine.low %v1254, %v1255
        %1260 = vst [vmem:[#allocation3 + $0x4] sm:$0xff] %v1258
        %v1261 = vld [vmem:[#allocation3] sm:$0xff]
        %v1262 = vld [vmem:[#allocation3 + $0x8] sm:$0xf]
        %v1265 = vcombine.high %v1261, %v1261
        %1266 = vrot.lane.b32.xlu0 %v1261, 17
        %v1267 = vpop.permute.xlu0 %1266
        %1268 = vrot.lane.b32.xlu0 %v1265, 17
        %v1269 = vpop.permute.xlu0 %1268
        %1270 = vrot.lane.b32.xlu0 %v1262, 17
        %v1271 = vpop.permute.xlu0 %1270
        %v1272 = vsel %vm378, %v1267, %v1269
        %v1273 = vsel %vm378, %v1269, %v1271
        %v1276 = vsel %vm310, %v1272, 0.0
        %v1277 = vsel %vm311, %v1273, 0.0
        %v1278 = vld [vmem:[%s3] sm:$0xf]
        %s1279 = scalar_lea.vmem %s3, 4
        %v1280 = vld [vmem:[%s1279] sm:$0xf]
        %1281 = vrot.lane.b32.xlu0 %v1261, 16
        %v1282 = vpop.permute.xlu0 %1281
        %1283 = vrot.lane.b32.xlu0 %v1265, 16
        %v1284 = vpop.permute.xlu0 %1283
        %1285 = vrot.lane.b32.xlu0 %v1262, 16
        %v1286 = vpop.permute.xlu0 %1285
        %v1287 = vsel %vm394, %v1282, %v1284
        %v1288 = vsel %vm394, %v1284, %v1286
        %vm1289 = vcmask 31744
        %v1291 = vsel %vm1289, %v1280, 0
        %vm1293 = vcmask 1043456
        %v1294 = vsel %vm1293, %v1287, 0
        %v1296 = vsel %vm1293, %v1288, 0
        %1298 = vmatprep.subr.mxu0 %v1296
        %1299 = vmatpush1.msra.mxu0 %v1294
        %1300 = vmatprep.subr.mxu0 0.0
        %1301 = vmatpush1.msra.mxu0 0.0
        %1302 = vmatprep.subr.mxu0 0.0
        %1303 = vmatpush1.msra.mxu0 0.0
        %1304 = vmatprep.subr.mxu0 0.0
        %1305 = vmatpush1.msra.mxu0 0.0
        %1306 = vmatprep.subr.mxu0 0.0
        %1307 = vmatpush1.msra.mxu0 0.0
        %1308 = vmatprep.subr.mxu0 0.0
        %1309 = vmatpush1.msra.mxu0 0.0
        %1310 = vmatprep.subr.mxu0 0.0
        %1311 = vmatpush1.msra.mxu0 0.0
        %1312 = vmatprep.subr.mxu0 0.0
        %1313 = vmatpush1.msra.mxu0 0.0
        %1314 = vmatprep.subr.mxu0 0.0
        %1315 = vmatpush1.msra.mxu0 0.0
        %1316 = vmatprep.subr.mxu0 0.0
        %1317 = vmatpush1.msra.mxu0 0.0
        %1318 = vmatprep.subr.mxu0 0.0
        %1319 = vmatpush1.msra.mxu0 0.0
        %1320 = vmatprep.subr.mxu0 0.0
        %1321 = vmatpush1.msra.mxu0 0.0
        %1322 = vmatprep.subr.mxu0 0.0
        %1323 = vmatpush1.msra.mxu0 0.0
        %1324 = vmatprep.subr.mxu0 0.0
        %1325 = vmatpush1.msra.mxu0 0.0
        %1326 = vmatprep.subr.mxu0 0.0
        %1327 = vmatpush1.msra.mxu0 0.0
        %1328 = vmatprep.subr.mxu0 0.0
        %1329 = vmatpush1.msra.mxu0 0.0
        %1330 = vmatprep.subr.mxu0 0.0
        %1331 = vmatpush1.msra.mxu0 0.0
        %1332 = vmatprep.subr.mxu0 0.0
        %1333 = vmatpush1.msra.mxu0 0.0
        %1334 = vmatprep.subr.mxu0 0.0
        %1335 = vmatpush1.msra.mxu0 0.0
        %1336 = vmatprep.subr.mxu0 0.0
        %1337 = vmatpush1.msra.mxu0 0.0
        %1338 = vmatprep.subr.mxu0 0.0
        %1339 = vmatpush1.msra.mxu0 0.0
        %1340 = vmatprep.subr.mxu0 0.0
        %1341 = vmatpush1.msra.mxu0 0.0
        %1342 = vmatprep.subr.mxu0 0.0
        %1343 = vmatpush1.msra.mxu0 0.0
        %1344 = vmatprep.subr.mxu0 0.0
        %1345 = vmatpush1.msra.mxu0 0.0
        %1346 = vmatprep.subr.mxu0 0.0
        %1347 = vmatpush1.msra.mxu0 0.0
        %1348 = vmatprep.subr.mxu0 0.0
        %1349 = vmatpush1.msra.mxu0 0.0
        %1350 = vmatprep.subr.mxu0 0.0
        %1351 = vmatpush1.msra.mxu0 0.0
        %1352 = vmatprep.subr.mxu0 0.0
        %1353 = vmatpush1.msra.mxu0 0.0
        %1354 = vmatprep.subr.mxu0 0.0
        %1355 = vmatpush1.msra.mxu0 0.0
        %1356 = vmatprep.subr.mxu0 0.0
        %1357 = vmatpush1.msra.mxu0 0.0
        %1358 = vmatprep.subr.mxu0 0.0
        %1359 = vmatpush1.msra.mxu0 0.0
        %1360 = vmatprep.subr.mxu0 0.0
        %1361 = vmatpush1.msra.mxu0 0.0
        %1362 = vmatprep.mubr.f32.mxu0 0.0
        %1363 = vmatmul.mubr.f32.gmra.mrb[0].mxu0 %v1291
        %v1364 = vpop.f32.mrb[0].mxu0
        %v1365 = vadd.f32 0.0, %v1364
        %v1366 = vpop.f32.mrb[0].mxu0
        %v1367 = vadd.f32 0.0, %v1366
        %1368 = vdwg.mxu0
        %v1370 = vsel %vm1289, %v1278, 0
        %v1373 = vsel %vm1293, %v1276, 0
        %v1376 = vsel %vm1293, %v1277, 0
        %1378 = vmatprep.subr.mxu0 %v1376
        %1379 = vmatpush1.msra.mxu0 %v1373
        %1380 = vmatprep.subr.mxu0 0.0
        %1381 = vmatpush1.msra.mxu0 0.0
        %1382 = vmatprep.subr.mxu0 0.0
        %1383 = vmatpush1.msra.mxu0 0.0
        %1384 = vmatprep.subr.mxu0 0.0
        %1385 = vmatpush1.msra.mxu0 0.0
        %1386 = vmatprep.subr.mxu0 0.0
        %1387 = vmatpush1.msra.mxu0 0.0
        %1388 = vmatprep.subr.mxu0 0.0
        %1389 = vmatpush1.msra.mxu0 0.0
        %1390 = vmatprep.subr.mxu0 0.0
        %1391 = vmatpush1.msra.mxu0 0.0
        %1392 = vmatprep.subr.mxu0 0.0
        %1393 = vmatpush1.msra.mxu0 0.0
        %1394 = vmatprep.subr.mxu0 0.0
        %1395 = vmatpush1.msra.mxu0 0.0
        %1396 = vmatprep.subr.mxu0 0.0
        %1397 = vmatpush1.msra.mxu0 0.0
        %1398 = vmatprep.subr.mxu0 0.0
        %1399 = vmatpush1.msra.mxu0 0.0
        %1400 = vmatprep.subr.mxu0 0.0
        %1401 = vmatpush1.msra.mxu0 0.0
        %1402 = vmatprep.subr.mxu0 0.0
        %1403 = vmatpush1.msra.mxu0 0.0
        %1404 = vmatprep.subr.mxu0 0.0
        %1405 = vmatpush1.msra.mxu0 0.0
        %1406 = vmatprep.subr.mxu0 0.0
        %1407 = vmatpush1.msra.mxu0 0.0
        %1408 = vmatprep.subr.mxu0 0.0
        %1409 = vmatpush1.msra.mxu0 0.0
        %1410 = vmatprep.subr.mxu0 0.0
        %1411 = vmatpush1.msra.mxu0 0.0
        %1412 = vmatprep.subr.mxu0 0.0
        %1413 = vmatpush1.msra.mxu0 0.0
        %1414 = vmatprep.subr.mxu0 0.0
        %1415 = vmatpush1.msra.mxu0 0.0
        %1416 = vmatprep.subr.mxu0 0.0
        %1417 = vmatpush1.msra.mxu0 0.0
        %1418 = vmatprep.subr.mxu0 0.0
        %1419 = vmatpush1.msra.mxu0 0.0
        %1420 = vmatprep.subr.mxu0 0.0
        %1421 = vmatpush1.msra.mxu0 0.0
        %1422 = vmatprep.subr.mxu0 0.0
        %1423 = vmatpush1.msra.mxu0 0.0
        %1424 = vmatprep.subr.mxu0 0.0
        %1425 = vmatpush1.msra.mxu0 0.0
        %1426 = vmatprep.subr.mxu0 0.0
        %1427 = vmatpush1.msra.mxu0 0.0
        %1428 = vmatprep.subr.mxu0 0.0
        %1429 = vmatpush1.msra.mxu0 0.0
        %1430 = vmatprep.subr.mxu0 0.0
        %1431 = vmatpush1.msra.mxu0 0.0
        %1432 = vmatprep.subr.mxu0 0.0
        %1433 = vmatpush1.msra.mxu0 0.0
        %1434 = vmatprep.subr.mxu0 0.0
        %1435 = vmatpush1.msra.mxu0 0.0
        %1436 = vmatprep.subr.mxu0 0.0
        %1437 = vmatpush1.msra.mxu0 0.0
        %1438 = vmatprep.subr.mxu0 0.0
        %1439 = vmatpush1.msra.mxu0 0.0
        %1440 = vmatprep.subr.mxu0 0.0
        %1441 = vmatpush1.msra.mxu0 0.0
        %1442 = vmatprep.mubr.f32.mxu0 0.0
        %1443 = vmatmul.mubr.f32.gmra.mrb[0].mxu0 %v1370
        %v1444 = vpop.f32.mrb[0].mxu0
        %v1445 = vadd.f32 %v1365, %v1444
        %v1446 = vpop.f32.mrb[0].mxu0
        %v1447 = vadd.f32 %v1367, %v1446
        %1448 = vdwg.mxu0
        %v1449 = vld [vmem:[#allocation3] sm:$0xff]
        %v1450 = vld [vmem:[#allocation3 + $0x8] sm:$0xf]
        %v1453 = vcombine.high %v1449, %v1449
        %1454 = vrot.lane.b32.xlu0 %v1449, 15
        %v1455 = vpop.permute.xlu0 %1454
        %1456 = vrot.lane.b32.xlu0 %v1453, 15
        %v1457 = vpop.permute.xlu0 %1456
        %1458 = vrot.lane.b32.xlu0 %v1450, 15
        %v1459 = vpop.permute.xlu0 %1458
        %v1460 = vsel %vm568, %v1455, %v1457
        %v1461 = vsel %vm568, %v1457, %v1459
        %v1464 = vsel %vm314, %v1460, 0.0
        %v1465 = vsel %vm315, %v1461, 0.0
        %s1466 = scalar_lea.vmem %s3, 8
        %v1467 = vld [vmem:[%s1466] sm:$0xf]
        %v1469 = vsel %vm1289, %v1467, 0
        %v1472 = vsel %vm1293, %v1464, 0
        %v1475 = vsel %vm1293, %v1465, 0
        %1477 = vmatprep.subr.mxu0 %v1475
        %1478 = vmatpush1.msra.mxu0 %v1472
        %1479 = vmatprep.subr.mxu0 0.0
        %1480 = vmatpush1.msra.mxu0 0.0
        %1481 = vmatprep.subr.mxu0 0.0
        %1482 = vmatpush1.msra.mxu0 0.0
        %1483 = vmatprep.subr.mxu0 0.0
        %1484 = vmatpush1.msra.mxu0 0.0
        %1485 = vmatprep.subr.mxu0 0.0
        %1486 = vmatpush1.msra.mxu0 0.0
        %1487 = vmatprep.subr.mxu0 0.0
        %1488 = vmatpush1.msra.mxu0 0.0
        %1489 = vmatprep.subr.mxu0 0.0
        %1490 = vmatpush1.msra.mxu0 0.0
        %1491 = vmatprep.subr.mxu0 0.0
        %1492 = vmatpush1.msra.mxu0 0.0
        %1493 = vmatprep.subr.mxu0 0.0
        %1494 = vmatpush1.msra.mxu0 0.0
        %1495 = vmatprep.subr.mxu0 0.0
        %1496 = vmatpush1.msra.mxu0 0.0
        %1497 = vmatprep.subr.mxu0 0.0
        %1498 = vmatpush1.msra.mxu0 0.0
        %1499 = vmatprep.subr.mxu0 0.0
        %1500 = vmatpush1.msra.mxu0 0.0
        %1501 = vmatprep.subr.mxu0 0.0
        %1502 = vmatpush1.msra.mxu0 0.0
        %1503 = vmatprep.subr.mxu0 0.0
        %1504 = vmatpush1.msra.mxu0 0.0
        %1505 = vmatprep.subr.mxu0 0.0
        %1506 = vmatpush1.msra.mxu0 0.0
        %1507 = vmatprep.subr.mxu0 0.0
        %1508 = vmatpush1.msra.mxu0 0.0
        %1509 = vmatprep.subr.mxu0 0.0
        %1510 = vmatpush1.msra.mxu0 0.0
        %1511 = vmatprep.subr.mxu0 0.0
        %1512 = vmatpush1.msra.mxu0 0.0
        %1513 = vmatprep.subr.mxu0 0.0
        %1514 = vmatpush1.msra.mxu0 0.0
        %1515 = vmatprep.subr.mxu0 0.0
        %1516 = vmatpush1.msra.mxu0 0.0
        %1517 = vmatprep.subr.mxu0 0.0
        %1518 = vmatpush1.msra.mxu0 0.0
        %1519 = vmatprep.subr.mxu0 0.0
        %1520 = vmatpush1.msra.mxu0 0.0
        %1521 = vmatprep.subr.mxu0 0.0
        %1522 = vmatpush1.msra.mxu0 0.0
        %1523 = vmatprep.subr.mxu0 0.0
        %1524 = vmatpush1.msra.mxu0 0.0
        %1525 = vmatprep.subr.mxu0 0.0
        %1526 = vmatpush1.msra.mxu0 0.0
        %1527 = vmatprep.subr.mxu0 0.0
        %1528 = vmatpush1.msra.mxu0 0.0
        %1529 = vmatprep.subr.mxu0 0.0
        %1530 = vmatpush1.msra.mxu0 0.0
        %1531 = vmatprep.subr.mxu0 0.0
        %1532 = vmatpush1.msra.mxu0 0.0
        %1533 = vmatprep.subr.mxu0 0.0
        %1534 = vmatpush1.msra.mxu0 0.0
        %1535 = vmatprep.subr.mxu0 0.0
        %1536 = vmatpush1.msra.mxu0 0.0
        %1537 = vmatprep.subr.mxu0 0.0
        %1538 = vmatpush1.msra.mxu0 0.0
        %1539 = vmatprep.subr.mxu0 0.0
        %1540 = vmatpush1.msra.mxu0 0.0
        %1541 = vmatprep.mubr.f32.mxu0 0.0
        %1542 = vmatmul.mubr.f32.gmra.mrb[0].mxu0 %v1469
        %v1543 = vpop.f32.mrb[0].mxu0
        %v1544 = vadd.f32 0.0, %v1543
        %v1545 = vpop.f32.mrb[0].mxu0
        %v1546 = vadd.f32 0.0, %v1545
        %1547 = vdwg.mxu0
        %v1548 = vadd.f32 %v1445, %v1544
        %v1549 = vadd.f32 %v1447, %v1546
        %v1550 = vld [vmem:[#allocation3] sm:$0xff]
        %v1551 = vld [vmem:[#allocation3 + $0x8] sm:$0xf]
        %v1554 = vcombine.high %v1550, %v1550
        %1555 = vrot.lane.b32.xlu0 %v1550, 1
        %v1556 = vpop.permute.xlu0 %1555
        %1557 = vrot.lane.b32.xlu0 %v1554, 1
        %v1558 = vpop.permute.xlu0 %1557
        %1559 = vrot.lane.b32.xlu0 %v1551, 1
        %v1560 = vpop.permute.xlu0 %1559
        %v1561 = vsel %vm670, %v1556, %v1558
        %v1562 = vsel %vm670, %v1558, %v1560
        %v1565 = vsel %vm310, %v1561, 0.0
        %v1566 = vsel %vm311, %v1562, 0.0
        %s1567 = scalar_lea.vmem %s3, 12
        %v1568 = vld [vmem:[%s1567] sm:$0xf]
        %v1570 = vsel %vm1289, %v1568, 0
        %v1573 = vsel %vm1293, %v1565, 0
        %v1576 = vsel %vm1293, %v1566, 0
        %1578 = vmatprep.subr.mxu0 %v1576
        %1579 = vmatpush1.msra.mxu0 %v1573
        %1580 = vmatprep.subr.mxu0 0.0
        %1581 = vmatpush1.msra.mxu0 0.0
        %1582 = vmatprep.subr.mxu0 0.0
        %1583 = vmatpush1.msra.mxu0 0.0
        %1584 = vmatprep.subr.mxu0 0.0
        %1585 = vmatpush1.msra.mxu0 0.0
        %1586 = vmatprep.subr.mxu0 0.0
        %1587 = vmatpush1.msra.mxu0 0.0
        %1588 = vmatprep.subr.mxu0 0.0
        %1589 = vmatpush1.msra.mxu0 0.0
        %1590 = vmatprep.subr.mxu0 0.0
        %1591 = vmatpush1.msra.mxu0 0.0
        %1592 = vmatprep.subr.mxu0 0.0
        %1593 = vmatpush1.msra.mxu0 0.0
        %1594 = vmatprep.subr.mxu0 0.0
        %1595 = vmatpush1.msra.mxu0 0.0
        %1596 = vmatprep.subr.mxu0 0.0
        %1597 = vmatpush1.msra.mxu0 0.0
        %1598 = vmatprep.subr.mxu0 0.0
        %1599 = vmatpush1.msra.mxu0 0.0
        %1600 = vmatprep.subr.mxu0 0.0
        %1601 = vmatpush1.msra.mxu0 0.0
        %1602 = vmatprep.subr.mxu0 0.0
        %1603 = vmatpush1.msra.mxu0 0.0
        %1604 = vmatprep.subr.mxu0 0.0
        %1605 = vmatpush1.msra.mxu0 0.0
        %1606 = vmatprep.subr.mxu0 0.0
        %1607 = vmatpush1.msra.mxu0 0.0
        %1608 = vmatprep.subr.mxu0 0.0
        %1609 = vmatpush1.msra.mxu0 0.0
        %1610 = vmatprep.subr.mxu0 0.0
        %1611 = vmatpush1.msra.mxu0 0.0
        %1612 = vmatprep.subr.mxu0 0.0
        %1613 = vmatpush1.msra.mxu0 0.0
        %1614 = vmatprep.subr.mxu0 0.0
        %1615 = vmatpush1.msra.mxu0 0.0
        %1616 = vmatprep.subr.mxu0 0.0
        %1617 = vmatpush1.msra.mxu0 0.0
        %1618 = vmatprep.subr.mxu0 0.0
        %1619 = vmatpush1.msra.mxu0 0.0
        %1620 = vmatprep.subr.mxu0 0.0
        %1621 = vmatpush1.msra.mxu0 0.0
        %1622 = vmatprep.subr.mxu0 0.0
        %1623 = vmatpush1.msra.mxu0 0.0
        %1624 = vmatprep.subr.mxu0 0.0
        %1625 = vmatpush1.msra.mxu0 0.0
        %1626 = vmatprep.subr.mxu0 0.0
        %1627 = vmatpush1.msra.mxu0 0.0
        %1628 = vmatprep.subr.mxu0 0.0
        %1629 = vmatpush1.msra.mxu0 0.0
        %1630 = vmatprep.subr.mxu0 0.0
        %1631 = vmatpush1.msra.mxu0 0.0
        %1632 = vmatprep.subr.mxu0 0.0
        %1633 = vmatpush1.msra.mxu0 0.0
        %1634 = vmatprep.subr.mxu0 0.0
        %1635 = vmatpush1.msra.mxu0 0.0
        %1636 = vmatprep.subr.mxu0 0.0
        %1637 = vmatpush1.msra.mxu0 0.0
        %1638 = vmatprep.subr.mxu0 0.0
        %1639 = vmatpush1.msra.mxu0 0.0
        %1640 = vmatprep.subr.mxu0 0.0
        %1641 = vmatpush1.msra.mxu0 0.0
        %1642 = vmatprep.mubr.f32.mxu0 0.0
        %1643 = vmatmul.mubr.f32.gmra.mrb[0].mxu0 %v1570
        %v1644 = vpop.f32.mrb[0].mxu0
        %v1645 = vadd.f32 0.0, %v1644
        %v1646 = vpop.f32.mrb[0].mxu0
        %v1647 = vadd.f32 0.0, %v1646
        %1648 = vdwg.mxu0
        %v1649 = vadd.f32 %v1548, %v1645
        %v1650 = vadd.f32 %v1549, %v1647
        %v1651 = vld [vmem:[#allocation3 + $0x4] sm:$0xff]
        %s1652 = scalar_lea.vmem %s3, 16
        %v1653 = vld [vmem:[%s1652] sm:$0xf]
        %v1655 = vcombine.high %v1651, %v1651
        %v1657 = vsel %vm1289, %v1653, 0
        %v1659 = vsel %vm1293, %v1651, 0
        %v1661 = vsel %vm1293, %v1655, 0
        %1663 = vmatprep.subr.mxu0 %v1661
        %1664 = vmatpush1.msra.mxu0 %v1659
        %1665 = vmatprep.subr.mxu0 0.0
        %1666 = vmatpush1.msra.mxu0 0.0
        %1667 = vmatprep.subr.mxu0 0.0
        %1668 = vmatpush1.msra.mxu0 0.0
        %1669 = vmatprep.subr.mxu0 0.0
        %1670 = vmatpush1.msra.mxu0 0.0
        %1671 = vmatprep.subr.mxu0 0.0
        %1672 = vmatpush1.msra.mxu0 0.0
        %1673 = vmatprep.subr.mxu0 0.0
        %1674 = vmatpush1.msra.mxu0 0.0
        %1675 = vmatprep.subr.mxu0 0.0
        %1676 = vmatpush1.msra.mxu0 0.0
        %1677 = vmatprep.subr.mxu0 0.0
        %1678 = vmatpush1.msra.mxu0 0.0
        %1679 = vmatprep.subr.mxu0 0.0
        %1680 = vmatpush1.msra.mxu0 0.0
        %1681 = vmatprep.subr.mxu0 0.0
        %1682 = vmatpush1.msra.mxu0 0.0
        %1683 = vmatprep.subr.mxu0 0.0
        %1684 = vmatpush1.msra.mxu0 0.0
        %1685 = vmatprep.subr.mxu0 0.0
        %1686 = vmatpush1.msra.mxu0 0.0
        %1687 = vmatprep.subr.mxu0 0.0
        %1688 = vmatpush1.msra.mxu0 0.0
        %1689 = vmatprep.subr.mxu0 0.0
        %1690 = vmatpush1.msra.mxu0 0.0
        %1691 = vmatprep.subr.mxu0 0.0
        %1692 = vmatpush1.msra.mxu0 0.0
        %1693 = vmatprep.subr.mxu0 0.0
        %1694 = vmatpush1.msra.mxu0 0.0
        %1695 = vmatprep.subr.mxu0 0.0
        %1696 = vmatpush1.msra.mxu0 0.0
        %1697 = vmatprep.subr.mxu0 0.0
        %1698 = vmatpush1.msra.mxu0 0.0
        %1699 = vmatprep.subr.mxu0 0.0
        %1700 = vmatpush1.msra.mxu0 0.0
        %1701 = vmatprep.subr.mxu0 0.0
        %1702 = vmatpush1.msra.mxu0 0.0
        %1703 = vmatprep.subr.mxu0 0.0
        %1704 = vmatpush1.msra.mxu0 0.0
        %1705 = vmatprep.subr.mxu0 0.0
        %1706 = vmatpush1.msra.mxu0 0.0
        %1707 = vmatprep.subr.mxu0 0.0
        %1708 = vmatpush1.msra.mxu0 0.0
        %1709 = vmatprep.subr.mxu0 0.0
        %1710 = vmatpush1.msra.mxu0 0.0
        %1711 = vmatprep.subr.mxu0 0.0
        %1712 = vmatpush1.msra.mxu0 0.0
        %1713 = vmatprep.subr.mxu0 0.0
        %1714 = vmatpush1.msra.mxu0 0.0
        %1715 = vmatprep.subr.mxu0 0.0
        %1716 = vmatpush1.msra.mxu0 0.0
        %1717 = vmatprep.subr.mxu0 0.0
        %1718 = vmatpush1.msra.mxu0 0.0
        %1719 = vmatprep.subr.mxu0 0.0
        %1720 = vmatpush1.msra.mxu0 0.0
        %1721 = vmatprep.subr.mxu0 0.0
        %1722 = vmatpush1.msra.mxu0 0.0
        %1723 = vmatprep.subr.mxu0 0.0
        %1724 = vmatpush1.msra.mxu0 0.0
        %1725 = vmatprep.subr.mxu0 0.0
        %1726 = vmatpush1.msra.mxu0 0.0
        %1727 = vmatprep.mubr.f32.mxu0 0.0
        %1728 = vmatmul.mubr.f32.gmra.mrb[0].mxu0 %v1657
        %v1729 = vpop.f32.mrb[0].mxu0
        %v1730 = vadd.f32 0.0, %v1729
        %v1731 = vpop.f32.mrb[0].mxu0
        %v1732 = vadd.f32 0.0, %v1731
        %1733 = vdwg.mxu0
        %v1734 = vadd.f32 %v1649, %v1730
        %v1735 = vadd.f32 %v1650, %v1732
        %v1736 = vld [vmem:[#allocation3 + $0x4] sm:$0xff]
        %v1737 = vld [vmem:[#allocation3 + $0xc] sm:$0xf]
        %v1740 = vcombine.high %v1736, %v1736
        %1741 = vrot.lane.b32.xlu0 %v1736, 127
        %v1742 = vpop.permute.xlu0 %1741
        %1743 = vrot.lane.b32.xlu0 %v1740, 127
        %v1744 = vpop.permute.xlu0 %1743
        %1745 = vrot.lane.b32.xlu0 %v1737, 127
        %v1746 = vpop.permute.xlu0 %1745
        %v1747 = vsel %vm857, %v1742, %v1744
        %v1748 = vsel %vm857, %v1744, %v1746
        %v1751 = vsel %vm314, %v1747, 0.0
        %v1752 = vsel %vm315, %v1748, 0.0
        %s1753 = scalar_lea.vmem %s3, 20
        %v1754 = vld [vmem:[%s1753] sm:$0xf]
        %v1756 = vsel %vm1289, %v1754, 0
        %v1759 = vsel %vm1293, %v1751, 0
        %v1762 = vsel %vm1293, %v1752, 0
        %1764 = vmatprep.subr.mxu0 %v1762
        %1765 = vmatpush1.msra.mxu0 %v1759
        %1766 = vmatprep.subr.mxu0 0.0
        %1767 = vmatpush1.msra.mxu0 0.0
        %1768 = vmatprep.subr.mxu0 0.0
        %1769 = vmatpush1.msra.mxu0 0.0
        %1770 = vmatprep.subr.mxu0 0.0
        %1771 = vmatpush1.msra.mxu0 0.0
        %1772 = vmatprep.subr.mxu0 0.0
        %1773 = vmatpush1.msra.mxu0 0.0
        %1774 = vmatprep.subr.mxu0 0.0
        %1775 = vmatpush1.msra.mxu0 0.0
        %1776 = vmatprep.subr.mxu0 0.0
        %1777 = vmatpush1.msra.mxu0 0.0
        %1778 = vmatprep.subr.mxu0 0.0
        %1779 = vmatpush1.msra.mxu0 0.0
        %1780 = vmatprep.subr.mxu0 0.0
        %1781 = vmatpush1.msra.mxu0 0.0
        %1782 = vmatprep.subr.mxu0 0.0
        %1783 = vmatpush1.msra.mxu0 0.0
        %1784 = vmatprep.subr.mxu0 0.0
        %1785 = vmatpush1.msra.mxu0 0.0
        %1786 = vmatprep.subr.mxu0 0.0
        %1787 = vmatpush1.msra.mxu0 0.0
        %1788 = vmatprep.subr.mxu0 0.0
        %1789 = vmatpush1.msra.mxu0 0.0
        %1790 = vmatprep.subr.mxu0 0.0
        %1791 = vmatpush1.msra.mxu0 0.0
        %1792 = vmatprep.subr.mxu0 0.0
        %1793 = vmatpush1.msra.mxu0 0.0
        %1794 = vmatprep.subr.mxu0 0.0
        %1795 = vmatpush1.msra.mxu0 0.0
        %1796 = vmatprep.subr.mxu0 0.0
        %1797 = vmatpush1.msra.mxu0 0.0
        %1798 = vmatprep.subr.mxu0 0.0
        %1799 = vmatpush1.msra.mxu0 0.0
        %1800 = vmatprep.subr.mxu0 0.0
        %1801 = vmatpush1.msra.mxu0 0.0
        %1802 = vmatprep.subr.mxu0 0.0
        %1803 = vmatpush1.msra.mxu0 0.0
        %1804 = vmatprep.subr.mxu0 0.0
        %1805 = vmatpush1.msra.mxu0 0.0
        %1806 = vmatprep.subr.mxu0 0.0
        %1807 = vmatpush1.msra.mxu0 0.0
        %1808 = vmatprep.subr.mxu0 0.0
        %1809 = vmatpush1.msra.mxu0 0.0
        %1810 = vmatprep.subr.mxu0 0.0
        %1811 = vmatpush1.msra.mxu0 0.0
        %1812 = vmatprep.subr.mxu0 0.0
        %1813 = vmatpush1.msra.mxu0 0.0
        %1814 = vmatprep.subr.mxu0 0.0
        %1815 = vmatpush1.msra.mxu0 0.0
        %1816 = vmatprep.subr.mxu0 0.0
        %1817 = vmatpush1.msra.mxu0 0.0
        %1818 = vmatprep.subr.mxu0 0.0
        %1819 = vmatpush1.msra.mxu0 0.0
        %1820 = vmatprep.subr.mxu0 0.0
        %1821 = vmatpush1.msra.mxu0 0.0
        %1822 = vmatprep.subr.mxu0 0.0
        %1823 = vmatpush1.msra.mxu0 0.0
        %1824 = vmatprep.subr.mxu0 0.0
        %1825 = vmatpush1.msra.mxu0 0.0
        %1826 = vmatprep.subr.mxu0 0.0
        %1827 = vmatpush1.msra.mxu0 0.0
        %1828 = vmatprep.mubr.f32.mxu0 0.0
        %1829 = vmatmul.mubr.f32.gmra.mrb[0].mxu0 %v1756
        %v1830 = vpop.f32.mrb[0].mxu0
        %v1831 = vadd.f32 0.0, %v1830
        %v1832 = vpop.f32.mrb[0].mxu0
        %v1833 = vadd.f32 0.0, %v1832
        %1834 = vdwg.mxu0
        %v1835 = vadd.f32 %v1734, %v1831
        %v1836 = vadd.f32 %v1735, %v1833
        %v1837 = vld [vmem:[#allocation3 + $0x4] sm:$0xff]
        %v1838 = vld [vmem:[#allocation3 + $0xc] sm:$0xf]
        %v1841 = vcombine.high %v1837, %v1837
        %1842 = vrot.lane.b32.xlu0 %v1837, 113
        %v1843 = vpop.permute.xlu0 %1842
        %1844 = vrot.lane.b32.xlu0 %v1841, 113
        %v1845 = vpop.permute.xlu0 %1844
        %1846 = vrot.lane.b32.xlu0 %v1838, 113
        %v1847 = vpop.permute.xlu0 %1846
        %v1848 = vsel %vm959, %v1843, %v1845
        %v1849 = vsel %vm959, %v1845, %v1847
        %v1852 = vsel %vm310, %v1848, 0.0
        %v1853 = vsel %vm311, %v1849, 0.0
        %s1854 = scalar_lea.vmem %s3, 24
        %v1855 = vld [vmem:[%s1854] sm:$0xf]
        %v1857 = vsel %vm1289, %v1855, 0
        %v1860 = vsel %vm1293, %v1852, 0
        %v1863 = vsel %vm1293, %v1853, 0
        %1865 = vmatprep.subr.mxu0 %v1863
        %1866 = vmatpush1.msra.mxu0 %v1860
        %1867 = vmatprep.subr.mxu0 0.0
        %1868 = vmatpush1.msra.mxu0 0.0
        %1869 = vmatprep.subr.mxu0 0.0
        %1870 = vmatpush1.msra.mxu0 0.0
        %1871 = vmatprep.subr.mxu0 0.0
        %1872 = vmatpush1.msra.mxu0 0.0
        %1873 = vmatprep.subr.mxu0 0.0
        %1874 = vmatpush1.msra.mxu0 0.0
        %1875 = vmatprep.subr.mxu0 0.0
        %1876 = vmatpush1.msra.mxu0 0.0
        %1877 = vmatprep.subr.mxu0 0.0
        %1878 = vmatpush1.msra.mxu0 0.0
        %1879 = vmatprep.subr.mxu0 0.0
        %1880 = vmatpush1.msra.mxu0 0.0
        %1881 = vmatprep.subr.mxu0 0.0
        %1882 = vmatpush1.msra.mxu0 0.0
        %1883 = vmatprep.subr.mxu0 0.0
        %1884 = vmatpush1.msra.mxu0 0.0
        %1885 = vmatprep.subr.mxu0 0.0
        %1886 = vmatpush1.msra.mxu0 0.0
        %1887 = vmatprep.subr.mxu0 0.0
        %1888 = vmatpush1.msra.mxu0 0.0
        %1889 = vmatprep.subr.mxu0 0.0
        %1890 = vmatpush1.msra.mxu0 0.0
        %1891 = vmatprep.subr.mxu0 0.0
        %1892 = vmatpush1.msra.mxu0 0.0
        %1893 = vmatprep.subr.mxu0 0.0
        %1894 = vmatpush1.msra.mxu0 0.0
        %1895 = vmatprep.subr.mxu0 0.0
        %1896 = vmatpush1.msra.mxu0 0.0
        %1897 = vmatprep.subr.mxu0 0.0
        %1898 = vmatpush1.msra.mxu0 0.0
        %1899 = vmatprep.subr.mxu0 0.0
        %1900 = vmatpush1.msra.mxu0 0.0
        %1901 = vmatprep.subr.mxu0 0.0
        %1902 = vmatpush1.msra.mxu0 0.0
        %1903 = vmatprep.subr.mxu0 0.0
        %1904 = vmatpush1.msra.mxu0 0.0
        %1905 = vmatprep.subr.mxu0 0.0
        %1906 = vmatpush1.msra.mxu0 0.0
        %1907 = vmatprep.subr.mxu0 0.0
        %1908 = vmatpush1.msra.mxu0 0.0
        %1909 = vmatprep.subr.mxu0 0.0
        %1910 = vmatpush1.msra.mxu0 0.0
        %1911 = vmatprep.subr.mxu0 0.0
        %1912 = vmatpush1.msra.mxu0 0.0
        %1913 = vmatprep.subr.mxu0 0.0
        %1914 = vmatpush1.msra.mxu0 0.0
        %1915 = vmatprep.subr.mxu0 0.0
        %1916 = vmatpush1.msra.mxu0 0.0
        %1917 = vmatprep.subr.mxu0 0.0
        %1918 = vmatpush1.msra.mxu0 0.0
        %1919 = vmatprep.subr.mxu0 0.0
        %1920 = vmatpush1.msra.mxu0 0.0
        %1921 = vmatprep.subr.mxu0 0.0
        %1922 = vmatpush1.msra.mxu0 0.0
        %1923 = vmatprep.subr.mxu0 0.0
        %1924 = vmatpush1.msra.mxu0 0.0
        %1925 = vmatprep.subr.mxu0 0.0
        %1926 = vmatpush1.msra.mxu0 0.0
        %1927 = vmatprep.subr.mxu0 0.0
        %1928 = vmatpush1.msra.mxu0 0.0
        %1929 = vmatprep.mubr.f32.mxu0 0.0
        %1930 = vmatmul.mubr.f32.gmra.mrb[0].mxu0 %v1857
        %v1931 = vpop.f32.mrb[0].mxu0
        %v1932 = vadd.f32 0.0, %v1931
        %v1933 = vpop.f32.mrb[0].mxu0
        %v1934 = vadd.f32 0.0, %v1933
        %1935 = vdwg.mxu0
        %v1936 = vadd.f32 %v1835, %v1932
        %v1937 = vadd.f32 %v1836, %v1934
        %v1938 = vld [vmem:[#allocation3 + $0x4] sm:$0xff]
        %v1939 = vld [vmem:[#allocation3 + $0xc] sm:$0xf]
        %s1940 = scalar_lea.vmem %s3, 28
        %v1941 = vld [vmem:[%s1940] sm:$0xf]
        %v1944 = vcombine.high %v1938, %v1938
        %1945 = vrot.lane.b32.xlu0 %v1938, 112
        %v1946 = vpop.permute.xlu0 %1945
        %1947 = vrot.lane.b32.xlu0 %v1944, 112
        %v1948 = vpop.permute.xlu0 %1947
        %1949 = vrot.lane.b32.xlu0 %v1939, 112
        %v1950 = vpop.permute.xlu0 %1949
        %v1951 = vsel %vm1063, %v1946, %v1948
        %v1952 = vsel %vm1063, %v1948, %v1950
        %v1954 = vsel %vm1289, %v1941, 0
        %v1956 = vsel %vm1293, %v1951, 0
        %v1958 = vsel %vm1293, %v1952, 0
        %1960 = vmatprep.subr.mxu0 %v1958
        %1961 = vmatpush1.msra.mxu0 %v1956
        %1962 = vmatprep.subr.mxu0 0.0
        %1963 = vmatpush1.msra.mxu0 0.0
        %1964 = vmatprep.subr.mxu0 0.0
        %1965 = vmatpush1.msra.mxu0 0.0
        %1966 = vmatprep.subr.mxu0 0.0
        %1967 = vmatpush1.msra.mxu0 0.0
        %1968 = vmatprep.subr.mxu0 0.0
        %1969 = vmatpush1.msra.mxu0 0.0
        %1970 = vmatprep.subr.mxu0 0.0
        %1971 = vmatpush1.msra.mxu0 0.0
        %1972 = vmatprep.subr.mxu0 0.0
        %1973 = vmatpush1.msra.mxu0 0.0
        %1974 = vmatprep.subr.mxu0 0.0
        %1975 = vmatpush1.msra.mxu0 0.0
        %1976 = vmatprep.subr.mxu0 0.0
        %1977 = vmatpush1.msra.mxu0 0.0
        %1978 = vmatprep.subr.mxu0 0.0
        %1979 = vmatpush1.msra.mxu0 0.0
        %1980 = vmatprep.subr.mxu0 0.0
        %1981 = vmatpush1.msra.mxu0 0.0
        %1982 = vmatprep.subr.mxu0 0.0
        %1983 = vmatpush1.msra.mxu0 0.0
        %1984 = vmatprep.subr.mxu0 0.0
        %1985 = vmatpush1.msra.mxu0 0.0
        %1986 = vmatprep.subr.mxu0 0.0
        %1987 = vmatpush1.msra.mxu0 0.0
        %1988 = vmatprep.subr.mxu0 0.0
        %1989 = vmatpush1.msra.mxu0 0.0
        %1990 = vmatprep.subr.mxu0 0.0
        %1991 = vmatpush1.msra.mxu0 0.0
        %1992 = vmatprep.subr.mxu0 0.0
        %1993 = vmatpush1.msra.mxu0 0.0
        %1994 = vmatprep.subr.mxu0 0.0
        %1995 = vmatpush1.msra.mxu0 0.0
        %1996 = vmatprep.subr.mxu0 0.0
        %1997 = vmatpush1.msra.mxu0 0.0
        %1998 = vmatprep.subr.mxu0 0.0
        %1999 = vmatpush1.msra.mxu0 0.0
        %2000 = vmatprep.subr.mxu0 0.0
        %2001 = vmatpush1.msra.mxu0 0.0
        %2002 = vmatprep.subr.mxu0 0.0
        %2003 = vmatpush1.msra.mxu0 0.0
        %2004 = vmatprep.subr.mxu0 0.0
        %2005 = vmatpush1.msra.mxu0 0.0
        %2006 = vmatprep.subr.mxu0 0.0
        %2007 = vmatpush1.msra.mxu0 0.0
        %2008 = vmatprep.subr.mxu0 0.0
        %2009 = vmatpush1.msra.mxu0 0.0
        %2010 = vmatprep.subr.mxu0 0.0
        %2011 = vmatpush1.msra.mxu0 0.0
        %2012 = vmatprep.subr.mxu0 0.0
        %2013 = vmatpush1.msra.mxu0 0.0
        %2014 = vmatprep.subr.mxu0 0.0
        %2015 = vmatpush1.msra.mxu0 0.0
        %2016 = vmatprep.subr.mxu0 0.0
        %2017 = vmatpush1.msra.mxu0 0.0
        %2018 = vmatprep.subr.mxu0 0.0
        %2019 = vmatpush1.msra.mxu0 0.0
        %2020 = vmatprep.subr.mxu0 0.0
        %2021 = vmatpush1.msra.mxu0 0.0
        %2022 = vmatprep.subr.mxu0 0.0
        %2023 = vmatpush1.msra.mxu0 0.0
        %2024 = vmatprep.mubr.f32.mxu0 0.0
        %2025 = vmatmul.mubr.f32.gmra.mrb[0].mxu0 %v1954
        %v2026 = vpop.f32.mrb[0].mxu0
        %v2027 = vadd.f32 0.0, %v2026
        %v2028 = vpop.f32.mrb[0].mxu0
        %v2029 = vadd.f32 0.0, %v2028
        %2030 = vdwg.mxu0
        %v2031 = vadd.f32 %v1936, %v2027
        %v2032 = vadd.f32 %v1937, %v2029
        %v2033 = vld [vmem:[#allocation3 + $0x4] sm:$0xff]
        %v2034 = vld [vmem:[#allocation3 + $0xc] sm:$0xf]
        %v2037 = vcombine.high %v2033, %v2033
        %2038 = vrot.lane.b32.xlu0 %v2033, 111
        %v2039 = vpop.permute.xlu0 %2038
        %2040 = vrot.lane.b32.xlu0 %v2037, 111
        %v2041 = vpop.permute.xlu0 %2040
        %2042 = vrot.lane.b32.xlu0 %v2034, 111
        %v2043 = vpop.permute.xlu0 %2042
        %v2044 = vsel %vm1157, %v2039, %v2041
        %v2045 = vsel %vm1157, %v2041, %v2043
        %v2048 = vsel %vm314, %v2044, 0.0
        %v2049 = vsel %vm315, %v2045, 0.0
        %s2050 = scalar_lea.vmem %s3, 32
        %v2051 = vld [vmem:[%s2050] sm:$0xf]
        %v2053 = vsel %vm1289, %v2051, 0
        %v2056 = vsel %vm1293, %v2048, 0
        %v2059 = vsel %vm1293, %v2049, 0
        %2061 = vmatprep.subr.mxu0 %v2059
        %2062 = vmatpush1.msra.mxu0 %v2056
        %2063 = vmatprep.subr.mxu0 0.0
        %2064 = vmatpush1.msra.mxu0 0.0
        %2065 = vmatprep.subr.mxu0 0.0
        %2066 = vmatpush1.msra.mxu0 0.0
        %2067 = vmatprep.subr.mxu0 0.0
        %2068 = vmatpush1.msra.mxu0 0.0
        %2069 = vmatprep.subr.mxu0 0.0
        %2070 = vmatpush1.msra.mxu0 0.0
        %2071 = vmatprep.subr.mxu0 0.0
        %2072 = vmatpush1.msra.mxu0 0.0
        %2073 = vmatprep.subr.mxu0 0.0
        %2074 = vmatpush1.msra.mxu0 0.0
        %2075 = vmatprep.subr.mxu0 0.0
        %2076 = vmatpush1.msra.mxu0 0.0
        %2077 = vmatprep.subr.mxu0 0.0
        %2078 = vmatpush1.msra.mxu0 0.0
        %2079 = vmatprep.subr.mxu0 0.0
        %2080 = vmatpush1.msra.mxu0 0.0
        %2081 = vmatprep.subr.mxu0 0.0
        %2082 = vmatpush1.msra.mxu0 0.0
        %2083 = vmatprep.subr.mxu0 0.0
        %2084 = vmatpush1.msra.mxu0 0.0
        %2085 = vmatprep.subr.mxu0 0.0
        %2086 = vmatpush1.msra.mxu0 0.0
        %2087 = vmatprep.subr.mxu0 0.0
        %2088 = vmatpush1.msra.mxu0 0.0
        %2089 = vmatprep.subr.mxu0 0.0
        %2090 = vmatpush1.msra.mxu0 0.0
        %2091 = vmatprep.subr.mxu0 0.0
        %2092 = vmatpush1.msra.mxu0 0.0
        %2093 = vmatprep.subr.mxu0 0.0
        %2094 = vmatpush1.msra.mxu0 0.0
        %2095 = vmatprep.subr.mxu0 0.0
        %2096 = vmatpush1.msra.mxu0 0.0
        %2097 = vmatprep.subr.mxu0 0.0
        %2098 = vmatpush1.msra.mxu0 0.0
        %2099 = vmatprep.subr.mxu0 0.0
        %2100 = vmatpush1.msra.mxu0 0.0
        %2101 = vmatprep.subr.mxu0 0.0
        %2102 = vmatpush1.msra.mxu0 0.0
        %2103 = vmatprep.subr.mxu0 0.0
        %2104 = vmatpush1.msra.mxu0 0.0
        %2105 = vmatprep.subr.mxu0 0.0
        %2106 = vmatpush1.msra.mxu0 0.0
        %2107 = vmatprep.subr.mxu0 0.0
        %2108 = vmatpush1.msra.mxu0 0.0
        %2109 = vmatprep.subr.mxu0 0.0
        %2110 = vmatpush1.msra.mxu0 0.0
        %2111 = vmatprep.subr.mxu0 0.0
        %2112 = vmatpush1.msra.mxu0 0.0
        %2113 = vmatprep.subr.mxu0 0.0
        %2114 = vmatpush1.msra.mxu0 0.0
        %2115 = vmatprep.subr.mxu0 0.0
        %2116 = vmatpush1.msra.mxu0 0.0
        %2117 = vmatprep.subr.mxu0 0.0
        %2118 = vmatpush1.msra.mxu0 0.0
        %2119 = vmatprep.subr.mxu0 0.0
        %2120 = vmatpush1.msra.mxu0 0.0
        %2121 = vmatprep.subr.mxu0 0.0
        %2122 = vmatpush1.msra.mxu0 0.0
        %2123 = vmatprep.subr.mxu0 0.0
        %2124 = vmatpush1.msra.mxu0 0.0
        %2125 = vmatprep.mubr.f32.mxu0 0.0
        %2126 = vmatmul.mubr.f32.gmra.mrb[0].mxu0 %v2053
        %v2127 = vpop.f32.mrb[0].mxu0
        %v2128 = vadd.f32 0.0, %v2127
        %v2129 = vpop.f32.mrb[0].mxu0
        %v2130 = vadd.f32 0.0, %v2129
        %2131 = vdwg.mxu0
        %v2132 = vadd.f32 %v2031, %v2128
        %v2133 = vadd.f32 %v2032, %v2130
        %v2134 = vld [vmem:[%s4] sm:$0xf]
        %2136 = vset.pattern.permute.xlu0 0
        %2137 = vperm.xlu0 %2136, %v2134
        %v2138 = vpop.permute.xlu0 %2137
        %v2140 = vadd.f32 %v2132, %v2138
        %v2141 = vadd.f32 %v2133, %v2138
        %vm2142 = vcmp.ge.f32.partialorder %v2140, 0.0
        %vm2143 = vcmp.ge.f32.partialorder %v2141, 0.0
        %v2144 = vmul.f32 %v2140, 0.01
        %v2145 = vmul.f32 %v2141, 0.01
        %v2146 = vsel %vm2142, %v2140, %v2144
        %v2147 = vsel %vm2143, %v2141, %v2145
        %v2148 = vld [vmem:[%s5] sm:$0xf]
        %v2149 = vld [vmem:[%s6] sm:$0xf]
        %2151 = vset.pattern.permute.xlu0 0
        %2152 = vperm.xlu0 %2151, %v2149
        %v2153 = vpop.permute.xlu0 %2152
        %v2156 = vsel %vm1289, %v2148, 0
        %v2159 = vsel %vm1293, %v2146, 0
        %v2162 = vsel %vm1293, %v2147, 0
        %2164 = vmatprep.subr.mxu0 %v2162
        %2165 = vmatpush1.msra.mxu0 %v2159
        %2166 = vmatprep.subr.mxu0 0.0
        %2167 = vmatpush1.msra.mxu0 0.0
        %2168 = vmatprep.subr.mxu0 0.0
        %2169 = vmatpush1.msra.mxu0 0.0
        %2170 = vmatprep.subr.mxu0 0.0
        %2171 = vmatpush1.msra.mxu0 0.0
        %2172 = vmatprep.subr.mxu0 0.0
        %2173 = vmatpush1.msra.mxu0 0.0
        %2174 = vmatprep.subr.mxu0 0.0
        %2175 = vmatpush1.msra.mxu0 0.0
        %2176 = vmatprep.subr.mxu0 0.0
        %2177 = vmatpush1.msra.mxu0 0.0
        %2178 = vmatprep.subr.mxu0 0.0
        %2179 = vmatpush1.msra.mxu0 0.0
        %2180 = vmatprep.subr.mxu0 0.0
        %2181 = vmatpush1.msra.mxu0 0.0
        %2182 = vmatprep.subr.mxu0 0.0
        %2183 = vmatpush1.msra.mxu0 0.0
        %2184 = vmatprep.subr.mxu0 0.0
        %2185 = vmatpush1.msra.mxu0 0.0
        %2186 = vmatprep.subr.mxu0 0.0
        %2187 = vmatpush1.msra.mxu0 0.0
        %2188 = vmatprep.subr.mxu0 0.0
        %2189 = vmatpush1.msra.mxu0 0.0
        %2190 = vmatprep.subr.mxu0 0.0
        %2191 = vmatpush1.msra.mxu0 0.0
        %2192 = vmatprep.subr.mxu0 0.0
        %2193 = vmatpush1.msra.mxu0 0.0
        %2194 = vmatprep.subr.mxu0 0.0
        %2195 = vmatpush1.msra.mxu0 0.0
        %2196 = vmatprep.subr.mxu0 0.0
        %2197 = vmatpush1.msra.mxu0 0.0
        %2198 = vmatprep.subr.mxu0 0.0
        %2199 = vmatpush1.msra.mxu0 0.0
        %2200 = vmatprep.subr.mxu0 0.0
        %2201 = vmatpush1.msra.mxu0 0.0
        %2202 = vmatprep.subr.mxu0 0.0
        %2203 = vmatpush1.msra.mxu0 0.0
        %2204 = vmatprep.subr.mxu0 0.0
        %2205 = vmatpush1.msra.mxu0 0.0
        %2206 = vmatprep.subr.mxu0 0.0
        %2207 = vmatpush1.msra.mxu0 0.0
        %2208 = vmatprep.subr.mxu0 0.0
        %2209 = vmatpush1.msra.mxu0 0.0
        %2210 = vmatprep.subr.mxu0 0.0
        %2211 = vmatpush1.msra.mxu0 0.0
        %2212 = vmatprep.subr.mxu0 0.0
        %2213 = vmatpush1.msra.mxu0 0.0
        %2214 = vmatprep.subr.mxu0 0.0
        %2215 = vmatpush1.msra.mxu0 0.0
        %2216 = vmatprep.subr.mxu0 0.0
        %2217 = vmatpush1.msra.mxu0 0.0
        %2218 = vmatprep.subr.mxu0 0.0
        %2219 = vmatpush1.msra.mxu0 0.0
        %2220 = vmatprep.subr.mxu0 0.0
        %2221 = vmatpush1.msra.mxu0 0.0
        %2222 = vmatprep.subr.mxu0 0.0
        %2223 = vmatpush1.msra.mxu0 0.0
        %2224 = vmatprep.subr.mxu0 0.0
        %2225 = vmatpush1.msra.mxu0 0.0
        %2226 = vmatprep.subr.mxu0 0.0
        %2227 = vmatpush1.msra.mxu0 0.0
        %2228 = vmatprep.mubr.f32.mxu0 0.0
        %2229 = vmatmul.mubr.f32.gmra.mrb[0].mxu0 %v2156
        %v2230 = vpop.f32.mrb[0].mxu0
        %v2231 = vadd.f32 %v2153, %v2230
        %v2232 = vpop.f32.mrb[0].mxu0
        %v2233 = vadd.f32 %v2153, %v2232
        %2234 = vdwg.mxu0
        %vm2235 = vcmp.ge.f32.partialorder %v2231, 0.0
        %vm2236 = vcmp.ge.f32.partialorder %v2233, 0.0
        %v2237 = vmul.f32 %v2231, 0.01
        %v2238 = vmul.f32 %v2233, 0.01
        %v2239 = vsel %vm2235, %v2231, %v2237
        %v2240 = vsel %vm2236, %v2233, %v2238
        %v2242 = vadd.f32 %v2239, %v1651
        %v2243 = vadd.f32 %v2240, %v1655
        %v2246 = vcombine.low %v2242, %v2243
        %2248 = vst [vmem:[%s271] sm:$0xff] %v2246
        %s2249 = sand.u32 %s181, 1
        %s2250 = scalar_lea.sflag [#allocation5], %s2249
        %s2251 = sand.u32 %s181, 1
        %s2252 = smul.addr %s2251, 8
        %s2253 = scalar_lea.vmem [#allocation4], %s2252
        // Predicated region
        $region84: #{tpu_custom_call.1} parent=47 // pred_check
          %p2254 = pneg %p191
        $region85: #{tpu_custom_call.1} parent=47 // pred_check_branch
          %2256 = sbr.rel (%p2254) target = $region87
        $region86: #{tpu_custom_call.1} parent=47 // pred_region
          %s2258 = ssub.s32 128, 128
          %2259 = vsyncadd %s2250, %s2258
          %s2260 = smul.addr %s21, 2
          %s2261 = smul.addr %s2260, 64
          %s2262 = scalar_lea.hbm %s7, %s2261
          %s2264 = sshll.u32 %s2253, 4
          %s2265 = int_to_ptr.vmem [resolvable:$true] %s2264
          %2267 = dma.vmem_to_hbm [thread:$0]  %s2265, 128, %s2262, %s2250
        $region87: #{tpu_custom_call.1} parent=47 // pred_fallthru
          _
      $region48: #{tpu_custom_call.1} parent=5 // pred_fallthru
        _
      %p2268 = scmp.le.s32.totalorder 2, %s16
      // Predicated region
      $region88: #{tpu_custom_call.1} parent=5 // pred_check
        %p2269 = pneg %p2268
      $region89: #{tpu_custom_call.1} parent=5 // pred_check_branch
        %2271 = sbr.rel (%p2269) target = $region91
      $region90: #{tpu_custom_call.1} parent=5 // pred_region
        %s2272 = ssub.s32 %s16, 2
        // Predicated region
        $region92: #{tpu_custom_call.1} parent=90 // pred_check
          %p2273 = pneg %p197
        $region93: #{tpu_custom_call.1} parent=90 // pred_check_branch
          %2275 = sbr.rel (%p2273) target = $region95
        $region94: #{tpu_custom_call.1} parent=90 // pred_region
          %s2276 = sand.u32 %s182, 1
          %s2277 = scalar_lea.sflag [#allocation5], %s2276
          %s2278 = sand.u32 %s182, 1
          %s2279 = smul.addr %s2278, 8
          %s2280 = scalar_lea.vmem [#allocation4], %s2279
          %2281 = dma.done %s2277, 128
        $region95: #{tpu_custom_call.1} parent=90 // pred_fallthru
          _
      $region91: #{tpu_custom_call.1} parent=5 // pred_fallthru
        _
    $region6: #{tpu_custom_call.1} parent=1 // loop_footer
      %s20 = sadd.s32 1, %s16
    $region7: #{tpu_custom_call.1} parent=1 // loop_footer_branch
      %15 = sbr.rel target = $region3
    $region8: #{tpu_custom_call.1} parent=1 // loop_exit
      _
    %2282 = vsyncpa [#allocation5], 1
    %s2283 = scalar_lea.sflag [#allocation5], 1
    %2284 = vsyncpa %s2283, 1

</llo_original>
